<compile_context>
chip_gen: v7x
topology: tpu7x:2x2x1
jax: 0.10.0
libtpu: 0.0.40
codegen_flags: <defaults>
</compile_context>

<pallas_src>
import functools
import math

import jax
import jax.numpy as jnp
from jax.experimental import pallas as pl
from jax.experimental.pallas import tpu as pltpu

_EPS = 1e-5


# ------------------------------- Pallas kernel -------------------------------

def _circular_im2col(h, K, pad, L):
    """Build the (L, K*C) im2col matrix of a stride-1 circular conv.

    Row i, tap-block t holds h[(i + t - pad) % L, :].  The circular shift is a
    static pltpu.roll (XLU) so there are no unaligned slices and no host-side
    padding copy; the lane-axis concat is a cheap VMEM move.
    """
    cols = []
    for t in range(K):
        s = (pad - t) % L
        cols.append(h if s == 0 else pltpu.roll(h, shift=s, axis=0))
    return jnp.concatenate(cols, axis=1)


def _resblock_kernel(x_ref, s1_ref, b1_ref, w1_ref, s2_ref, b2_ref, w2_ref,
                     o_ref, *, K, pad, L, compute_dtype):
    x = x_ref[0]  # (L, C) f32, VMEM resident for the whole block

    # bn1 + relu (VPU, f32)
    h1 = jnp.maximum(x * s1_ref[...] + b1_ref[...], 0.0)

    # conv1: one MXU matmul with a K*C-deep contraction, f32 accumulation
    p1 = _circular_im2col(h1, K, pad, L).astype(compute_dtype)
    a1 = jnp.dot(p1, w1_ref[...], preferred_element_type=jnp.float32)  # (L, C)

    # bn2 + relu
    h2 = jnp.maximum(a1 * s2_ref[...] + b2_ref[...], 0.0)

    # conv2 + residual add (identity is the un-normalized input block)
    p2 = _circular_im2col(h2, K, pad, L).astype(compute_dtype)
    a2 = jnp.dot(p2, w2_ref[...], preferred_element_type=jnp.float32)

    o_ref[...] = (a2 + x)[None].astype(o_ref.dtype)


# --------------------------------- wrapper -----------------------------------

def _fold_bn(bn, eps):
    scale = bn["gamma"] * jax.lax.rsqrt(bn["var"] + eps)
    shift = bn["beta"] - bn["mean"] * scale
    return scale.astype(jnp.float32)[None, :], shift.astype(jnp.float32)[None, :]


def resblock_forward(x_ncl, params, *, eps=_EPS, compute_dtype=jnp.bfloat16):
    """Fused ResBlock forward. x_ncl: (B, C, L) in PyTorch NCL layout."""
    B, C, L = x_ncl.shape
    w1 = params["conv1_w"]  # (Cout, Cin, K), PyTorch Conv1d layout
    w2 = params["conv2_w"]
    Cout, Cin, K = w1.shape
    assert Cin == C and Cout == C, "residual add requires in_channels == out_channels"
    pad = (K - 1) // 2

    x = jnp.transpose(x_ncl, (0, 2, 1)).astype(jnp.float32)  # NCL -> NLC

    s1, b1 = _fold_bn(params["bn1"], eps)
    s2, b2 = _fold_bn(params["bn2"], eps)

    # Pack conv weights for the im2col contraction: (Cout, Cin, K) -> (K*Cin, Cout).
    w1p = jnp.transpose(w1, (2, 1, 0)).reshape(K * Cin, Cout).astype(compute_dtype)
    w2p = jnp.transpose(w2, (2, 1, 0)).reshape(K * Cout, Cout).astype(compute_dtype)

    kern = functools.partial(_resblock_kernel, K=K, pad=pad, L=L,
                             compute_dtype=compute_dtype)
    out = pl.pallas_call(
        kern,
        out_shape=jax.ShapeDtypeStruct((B, L, C), jnp.float32),
        grid=(B,),
        in_specs=[
            pl.BlockSpec((1, L, C), lambda b: (b, 0, 0)),       # x
            pl.BlockSpec((1, C), lambda b: (0, 0)),             # bn1 scale
            pl.BlockSpec((1, C), lambda b: (0, 0)),             # bn1 shift
            pl.BlockSpec((K * Cin, Cout), lambda b: (0, 0)),    # conv1 packed weight
            pl.BlockSpec((1, C), lambda b: (0, 0)),             # bn2 scale
            pl.BlockSpec((1, C), lambda b: (0, 0)),             # bn2 shift
            pl.BlockSpec((K * Cout, Cout), lambda b: (0, 0)),   # conv2 packed weight
        ],
        out_specs=pl.BlockSpec((1, L, C), lambda b: (b, 0, 0)),
        compiler_params=pltpu.CompilerParams(
            dimension_semantics=("parallel",),  # shard batch across TCs on v7x
        ),
    )(x, s1, b1, w1p, s2, b2, w2p)

    return jnp.transpose(out, (0, 2, 1))  # NLC -> NCL


# ------------------------- pure-JAX reference (f32) ---------------------------

def _resblock_ref(x_ncl, params, eps=_EPS):
    def bn(h, p):
        scale = p["gamma"] / jnp.sqrt(p["var"] + eps)
        shift = p["beta"] - p["mean"] * scale
        return h * scale[None, :, None] + shift[None, :, None]

    def conv_circ(h, w):
        K = w.shape[-1]
        pad = (K - 1) // 2
        hp = jnp.concatenate([h[:, :, -pad:], h, h[:, :, :pad]], axis=-1)
        return jax.lax.conv_general_dilated(
            hp, w, window_strides=(1,), padding="VALID",
            dimension_numbers=("NCH", "OIH", "NCH"))

    identity = x_ncl
    h = jax.nn.relu(bn(x_ncl, params["bn1"]))
    h = conv_circ(h, params["conv1_w"])
    h = jax.nn.relu(bn(h, params["bn2"]))
    h = conv_circ(h, params["conv2_w"])
    return h + identity


# ----------------------------------- main -------------------------------------

if __name__ == "__main__":
    key = jax.random.PRNGKey(0)
    B, C, L, K = 2, 128, 128, 5
    ks = jax.random.split(key, 11)

    x = jax.random.normal(ks[0], (B, C, L), jnp.float32)
    w_std = math.sqrt(2.0 / (C * K))  # kaiming_normal_, mode='fan_out', relu
    params = {
        "conv1_w": w_std * jax.random.normal(ks[1], (C, C, K), jnp.float32),
        "conv2_w": w_std * jax.random.normal(ks[2], (C, C, K), jnp.float32),
        "bn1": {
            "gamma": 1.0 + 0.1 * jax.random.normal(ks[3], (C,), jnp.float32),
            "beta": 0.1 * jax.random.normal(ks[4], (C,), jnp.float32),
            "mean": 0.1 * jax.random.normal(ks[5], (C,), jnp.float32),
            "var": 1.0 + 0.1 * jnp.abs(jax.random.normal(ks[6], (C,), jnp.float32)),
        },
        "bn2": {
            "gamma": 1.0 + 0.1 * jax.random.normal(ks[7], (C,), jnp.float32),
            "beta": 0.1 * jax.random.normal(ks[8], (C,), jnp.float32),
            "mean": 0.1 * jax.random.normal(ks[9], (C,), jnp.float32),
            "var": 1.0 + 0.1 * jnp.abs(jax.random.normal(ks[10], (C,), jnp.float32)),
        },
    }

    y = jax.block_until_ready(resblock_forward(x, params))
    assert y.shape == (B, C, L), y.shape
    assert bool(jnp.all(jnp.isfinite(y)))

    # correctness vs f32 reference (kernel uses bf16 MXU operands -> loose tol)
    y_ref = _resblock_ref(x, params)
    rel_err = float(jnp.max(jnp.abs(y - y_ref)) / (jnp.max(jnp.abs(y_ref)) + 1e-6))
    assert rel_err < 0.1, f"rel_err={rel_err}"

    print("KERNEL_OK")
</pallas_src>

<mosaic_0001>
module attributes {stable_mosaic.version = 11 : i64} {
  func.func @_resblock_kernel(%arg0: i32, %arg1: memref<1x128x128xf32, #tpu.memory_space<vmem>>, %arg2: memref<1x128xf32, #tpu.memory_space<vmem>>, %arg3: memref<1x128xf32, #tpu.memory_space<vmem>>, %arg4: memref<640x128xbf16, #tpu.memory_space<vmem>>, %arg5: memref<1x128xf32, #tpu.memory_space<vmem>>, %arg6: memref<1x128xf32, #tpu.memory_space<vmem>>, %arg7: memref<640x128xbf16, #tpu.memory_space<vmem>>, %arg8: memref<1x128x128xf32, #tpu.memory_space<vmem>>) attributes {dimension_semantics = [#tpu.dimension_semantics<parallel>], iteration_bounds = array<i64: 2>, scalar_prefetch = 0 : i64, scratch_operands = 0 : i64, tpu.core_type = #tpu.core_type<tc>, window_params = [{transform_indices = @transform_0, window_bounds = array<i64: 1, 128, 128>}, {pipeline_mode = #tpu.pipeline_mode<synchronous>, transform_indices = @transform_1, window_bounds = array<i64: 1, 128>}, {pipeline_mode = #tpu.pipeline_mode<synchronous>, transform_indices = @transform_2, window_bounds = array<i64: 1, 128>}, {pipeline_mode = #tpu.pipeline_mode<synchronous>, transform_indices = @transform_3, window_bounds = array<i64: 640, 128>}, {pipeline_mode = #tpu.pipeline_mode<synchronous>, transform_indices = @transform_4, window_bounds = array<i64: 1, 128>}, {pipeline_mode = #tpu.pipeline_mode<synchronous>, transform_indices = @transform_5, window_bounds = array<i64: 1, 128>}, {pipeline_mode = #tpu.pipeline_mode<synchronous>, transform_indices = @transform_6, window_bounds = array<i64: 640, 128>}, {transform_indices = @transform_7, window_bounds = array<i64: 1, 128, 128>}]} {
    %c0 = arith.constant 0 : index
    %c0_0 = arith.constant 0 : index
    %c0_1 = arith.constant 0 : index
    %0 = vector.load %arg1[%c0, %c0_0, %c0_1] : memref<1x128x128xf32, #tpu.memory_space<vmem>>, vector<1x128x128xf32>
    %1 = vector.shape_cast %0 : vector<1x128x128xf32> to vector<128x128xf32>
    %c0_2 = arith.constant 0 : index
    %c0_3 = arith.constant 0 : index
    %2 = vector.load %arg2[%c0_2, %c0_3] : memref<1x128xf32, #tpu.memory_space<vmem>>, vector<1x128xf32>
    %3 = vector.broadcast %2 : vector<1x128xf32> to vector<128x128xf32>
    %4 = arith.mulf %1, %3 : vector<128x128xf32>
    %c0_4 = arith.constant 0 : index
    %c0_5 = arith.constant 0 : index
    %5 = vector.load %arg3[%c0_4, %c0_5] : memref<1x128xf32, #tpu.memory_space<vmem>>, vector<1x128xf32>
    %6 = vector.broadcast %5 : vector<1x128xf32> to vector<128x128xf32>
    %7 = arith.addf %4, %6 : vector<128x128xf32>
    %cst = arith.constant 0.000000e+00 : f32
    %8 = vector.broadcast %cst : f32 to vector<128x128xf32>
    %9 = arith.maximumf %7, %8 : vector<128x128xf32>
    %c2_i32 = arith.constant 2 : i32
    %10 = tpu.dynamic_rotate %9 by %c2_i32 dim 0 : vector<128x128xf32>, i32 -> vector<128x128xf32>
    %c1_i32 = arith.constant 1 : i32
    %11 = tpu.dynamic_rotate %9 by %c1_i32 dim 0 : vector<128x128xf32>, i32 -> vector<128x128xf32>
    %c127_i32 = arith.constant 127 : i32
    %12 = tpu.dynamic_rotate %9 by %c127_i32 dim 0 : vector<128x128xf32>, i32 -> vector<128x128xf32>
    %c126_i32 = arith.constant 126 : i32
    %13 = tpu.dynamic_rotate %9 by %c126_i32 dim 0 : vector<128x128xf32>, i32 -> vector<128x128xf32>
    %14 = tpu.concatenate %10, %11, %9, %12, %13 in 1 : vector<128x128xf32>, vector<128x128xf32>, vector<128x128xf32>, vector<128x128xf32>, vector<128x128xf32> -> vector<128x640xf32>
    %15 = arith.truncf %14 : vector<128x640xf32> to vector<128x640xbf16>
    %c0_6 = arith.constant 0 : index
    %c0_7 = arith.constant 0 : index
    %16 = vector.load %arg4[%c0_6, %c0_7] : memref<640x128xbf16, #tpu.memory_space<vmem>>, vector<640x128xbf16>
    %cst_8 = arith.constant dense<0.000000e+00> : vector<128x128xf32>
    %17 = tpu.matmul %15, %16, %cst_8 {dimension_numbers = #tpu.dot_dimension_numbers<[1], [0], [0], [1], [0, 0, 1, 1], [], []>} : vector<128x640xbf16>, vector<640x128xbf16>, vector<128x128xf32> -> vector<128x128xf32>
    %c0_9 = arith.constant 0 : index
    %c0_10 = arith.constant 0 : index
    %18 = vector.load %arg5[%c0_9, %c0_10] : memref<1x128xf32, #tpu.memory_space<vmem>>, vector<1x128xf32>
    %19 = vector.broadcast %18 : vector<1x128xf32> to vector<128x128xf32>
    %20 = arith.mulf %17, %19 : vector<128x128xf32>
    %c0_11 = arith.constant 0 : index
    %c0_12 = arith.constant 0 : index
    %21 = vector.load %arg6[%c0_11, %c0_12] : memref<1x128xf32, #tpu.memory_space<vmem>>, vector<1x128xf32>
    %22 = vector.broadcast %21 : vector<1x128xf32> to vector<128x128xf32>
    %23 = arith.addf %20, %22 : vector<128x128xf32>
    %cst_13 = arith.constant 0.000000e+00 : f32
    %24 = vector.broadcast %cst_13 : f32 to vector<128x128xf32>
    %25 = arith.maximumf %23, %24 : vector<128x128xf32>
    %c2_i32_14 = arith.constant 2 : i32
    %26 = tpu.dynamic_rotate %25 by %c2_i32_14 dim 0 : vector<128x128xf32>, i32 -> vector<128x128xf32>
    %c1_i32_15 = arith.constant 1 : i32
    %27 = tpu.dynamic_rotate %25 by %c1_i32_15 dim 0 : vector<128x128xf32>, i32 -> vector<128x128xf32>
    %c127_i32_16 = arith.constant 127 : i32
    %28 = tpu.dynamic_rotate %25 by %c127_i32_16 dim 0 : vector<128x128xf32>, i32 -> vector<128x128xf32>
    %c126_i32_17 = arith.constant 126 : i32
    %29 = tpu.dynamic_rotate %25 by %c126_i32_17 dim 0 : vector<128x128xf32>, i32 -> vector<128x128xf32>
    %30 = tpu.concatenate %26, %27, %25, %28, %29 in 1 : vector<128x128xf32>, vector<128x128xf32>, vector<128x128xf32>, vector<128x128xf32>, vector<128x128xf32> -> vector<128x640xf32>
    %31 = arith.truncf %30 : vector<128x640xf32> to vector<128x640xbf16>
    %c0_18 = arith.constant 0 : index
    %c0_19 = arith.constant 0 : index
    %32 = vector.load %arg7[%c0_18, %c0_19] : memref<640x128xbf16, #tpu.memory_space<vmem>>, vector<640x128xbf16>
    %cst_20 = arith.constant dense<0.000000e+00> : vector<128x128xf32>
    %33 = tpu.matmul %31, %32, %cst_20 {dimension_numbers = #tpu.dot_dimension_numbers<[1], [0], [0], [1], [0, 0, 1, 1], [], []>} : vector<128x640xbf16>, vector<640x128xbf16>, vector<128x128xf32> -> vector<128x128xf32>
    %34 = arith.addf %33, %1 : vector<128x128xf32>
    %35 = vector.shape_cast %34 : vector<128x128xf32> to vector<1x128x128xf32>
    %c0_21 = arith.constant 0 : index
    %c0_22 = arith.constant 0 : index
    %c0_23 = arith.constant 0 : index
    %36 = vector.load %arg8[%c0_21, %c0_22, %c0_23] : memref<1x128x128xf32, #tpu.memory_space<vmem>>, vector<1x128x128xf32>
    tpu.vector_store %arg8[%c0_21, %c0_22, %c0_23], %35 {strides = array<i32>} : memref<1x128x128xf32, #tpu.memory_space<vmem>>, vector<1x128x128xf32>,
    return
  }
  func.func @transform_0(%arg0: i32) -> (i32, i32, i32) {
    %c0_i32 = arith.constant 0 : i32
    %c0_i32_0 = arith.constant 0 : i32
    %c0_i32_1 = arith.constant 0 : i32
    return %arg0, %c0_i32, %c0_i32_0 : i32, i32, i32
  }
  func.func @transform_1(%arg0: i32) -> (i32, i32) {
    %c0_i32 = arith.constant 0 : i32
    %c0_i32_0 = arith.constant 0 : i32
    %c0_i32_1 = arith.constant 0 : i32
    return %c0_i32, %c0_i32_0 : i32, i32
  }
  func.func @transform_2(%arg0: i32) -> (i32, i32) {
    %c0_i32 = arith.constant 0 : i32
    %c0_i32_0 = arith.constant 0 : i32
    %c0_i32_1 = arith.constant 0 : i32
    return %c0_i32, %c0_i32_0 : i32, i32
  }
  func.func @transform_3(%arg0: i32) -> (i32, i32) {
    %c0_i32 = arith.constant 0 : i32
    %c0_i32_0 = arith.constant 0 : i32
    %c0_i32_1 = arith.constant 0 : i32
    return %c0_i32, %c0_i32_0 : i32, i32
  }
  func.func @transform_4(%arg0: i32) -> (i32, i32) {
    %c0_i32 = arith.constant 0 : i32
    %c0_i32_0 = arith.constant 0 : i32
    %c0_i32_1 = arith.constant 0 : i32
    return %c0_i32, %c0_i32_0 : i32, i32
  }
  func.func @transform_5(%arg0: i32) -> (i32, i32) {
    %c0_i32 = arith.constant 0 : i32
    %c0_i32_0 = arith.constant 0 : i32
    %c0_i32_1 = arith.constant 0 : i32
    return %c0_i32, %c0_i32_0 : i32, i32
  }
  func.func @transform_6(%arg0: i32) -> (i32, i32) {
    %c0_i32 = arith.constant 0 : i32
    %c0_i32_0 = arith.constant 0 : i32
    %c0_i32_1 = arith.constant 0 : i32
    return %c0_i32, %c0_i32_0 : i32, i32
  }
  func.func @transform_7(%arg0: i32) -> (i32, i32, i32) {
    %c0_i32 = arith.constant 0 : i32
    %c0_i32_0 = arith.constant 0 : i32
    %c0_i32_1 = arith.constant 0 : i32
    return %arg0, %c0_i32, %c0_i32_0 : i32, i32, i32
  }
}

</mosaic_0001>

<llo_original>
// kernel: tpu_custom_call.1
$region0: #{tpu_custom_call.1}
  #allocation0 [shape = 'u32[]', space=smem, size = 0x4, offset = 0x4, fixed_abs, tag = 'smem constant byte address 0x4 - core index']
  #allocation1 [shape = 'u32[144,128]{1,0:T(1,128)}', space=vmem, size = 0x12000, scoped, tag = 'internal scratch']
  %s0 = inlined_call_operand.hbm [shape: f32[2,128,128], index: 0, kind: input, shape index: {}]
  %s1 = inlined_call_operand.vmem [shape: f32[1,128], index: 1, kind: input, shape index: {}]
  %s2 = inlined_call_operand.vmem [shape: f32[1,128], index: 2, kind: input, shape index: {}]
  %s3 = inlined_call_operand.hbm [shape: bf16[640,128], index: 3, kind: input, shape index: {}]
  %s4 = inlined_call_operand.vmem [shape: f32[1,128], index: 4, kind: input, shape index: {}]
  %s5 = inlined_call_operand.vmem [shape: f32[1,128], index: 5, kind: input, shape index: {}]
  %s6 = inlined_call_operand.hbm [shape: bf16[640,128], index: 6, kind: input, shape index: {}]
  %s7 = inlined_call_operand.hbm [shape: f32[2,128,128], index: 7, kind: output, shape index: {}]
  %s8 = sld [smem:[#allocation0]]
  $region73: #{tpu_custom_call.1} parent=0
    _
  %s10 = ssub.s32 1, %s8
  %s11 = scalar_select 0, %s10, %s8
  $region1: #{tpu_custom_call.1} parent=0
    #allocation2 [shape = 'u8[131072]{0}', space=vmem, size = 0x20000, scoped, tag = 'input window, operand 0']
    #allocation3 [shape = 's32[2]{0}', space=sflag, size = 0x8, scoped, tag = 'scoped memory for tpu_custom_call.1']
    #allocation4 [shape = 's32[2]{0}', space=sflag, size = 0x8, scoped, tag = 'scoped memory for tpu_custom_call.1']
    #allocation5 [shape = 'u8[163840]{0}', space=vmem, size = 0x28000, scoped, tag = 'input window, operand 3, single buffered']
    #allocation6 [shape = 's32[1]{0}', space=sflag, size = 0x4, scoped, tag = 'scoped memory for tpu_custom_call.1']
    #allocation7 [shape = 'u8[163840]{0}', space=vmem, size = 0x28000, scoped, tag = 'input window, operand 6, single buffered']
    #allocation8 [shape = 'u8[131072]{0}', space=vmem, size = 0x20000, scoped, tag = 'output window, operand 0']
    %12 = vsyncpa [#allocation3], 0
    %s13 = scalar_lea.sflag [#allocation3], 1
    %14 = vsyncpa %s13, 0
    %15 = vsyncpa [#allocation6], 0
    %16 = vsyncpa [#allocation4], 0
    %s17 = scalar_lea.sflag [#allocation4], 1
    %18 = vsyncpa %s17, 0
    loop: start=0, step=1, limit=4
    $region2: #{tpu_custom_call.1} parent=1 // loop_pre_header
      _
    $region3: #{tpu_custom_call.1} parent=1 // loop_header
      %s20 = sphi 0, %s24
      %p21 = scmp.ge.s32.totalorder %s20, 4
      %s30 = sphi 0, %s32
      %s33 = sphi 0, %s30
      %s34 = sphi 0, %s33
      %s50 = sphi 0, %s34
      %s54 = sphi 0, %s54
      %s56 = sphi 0, %s54
      %s57 = sphi 0, %s56
      %s71 = sphi 0, %s57
      %s75 = sphi 0, %s75
      %s77 = sphi 0, %s75
      %s78 = sphi 0, %s77
      %s92 = sphi 0, %s78
      %s96 = sphi 0, %s96
      %s98 = sphi 0, %s96
      %s99 = sphi 0, %s98
      %s113 = sphi 0, %s99
      %s117 = sphi 0, %s117
      %s119 = sphi 0, %s117
      %s120 = sphi 0, %s119
      %s134 = sphi 0, %s120
      %s138 = sphi 0, %s138
      %s140 = sphi 0, %s138
      %s141 = sphi 0, %s140
      %s155 = sphi 0, %s141
      %s159 = sphi 0, %s159
      %s161 = sphi 0, %s159
      %s162 = sphi 0, %s161
      %s176 = sphi 0, %s162
      %s182 = sphi 0, %s184
      %s185 = sphi 0, %s182
      %s186 = sphi 0, %s185
      %s202 = sphi 0, %s186
    $region4: #{tpu_custom_call.1} parent=1 // loop_header_branch
      %23 = sbr.rel (%p21) target = $region8
    $region5: #{tpu_custom_call.1} parent=1 // loop_body
      %s25 = ssub.s32 %s20, 1
      %s26 = ssub.s32 %s20, 2
      %s27 = sadd.s32 %s20, 1
      %s28 = ssub.s32 %s20, %s27
      %p29 = scmp.eq.s32.totalorder %s28, 0
      %s31 = sadd.s32 %s30, 1
      %s32 = scalar_select %p29, %s30, %s31
      %p35 = pneg %p29
      %p36 = scmp.eq.s32.totalorder %s20, 1
      %p37 = por %p35, %p36
      %p38 = scmp.ne.s32.totalorder %s30, %s33
      %p39 = scmp.eq.s32.totalorder %s20, 0
      %p40 = por %p38, %p39
      %p41 = scmp.ne.s32.totalorder %s30, %s33
      %p42 = scmp.eq.s32.totalorder %s25, 1
      %p43 = por %p41, %p42
      %p44 = scmp.ne.s32.totalorder %s33, %s34
      %p45 = scmp.eq.s32.totalorder %s25, 0
      %p46 = por %p44, %p45
      %p47 = scmp.ne.s32.totalorder %s33, %s34
      %p48 = scmp.eq.s32.totalorder %s26, 1
      %p49 = por %p47, %p48
      %p51 = scmp.ne.s32.totalorder %s34, %s50
      %p52 = scmp.eq.s32.totalorder %s26, 0
      %p53 = por %p51, %p52
      %s55 = sadd.s32 %s54, 1
      %p58 = scmp.eq.s32.totalorder %s20, 1
      %p59 = scmp.ne.s32.totalorder %s54, %s56
      %p60 = scmp.eq.s32.totalorder %s20, 0
      %p61 = por %p59, %p60
      %p62 = scmp.ne.s32.totalorder %s54, %s56
      %p63 = scmp.eq.s32.totalorder %s25, 1
      %p64 = por %p62, %p63
      %p65 = scmp.ne.s32.totalorder %s56, %s57
      %p66 = scmp.eq.s32.totalorder %s25, 0
      %p67 = por %p65, %p66
      %p68 = scmp.ne.s32.totalorder %s56, %s57
      %p69 = scmp.eq.s32.totalorder %s26, 1
      %p70 = por %p68, %p69
      %p72 = scmp.ne.s32.totalorder %s57, %s71
      %p73 = scmp.eq.s32.totalorder %s26, 0
      %p74 = por %p72, %p73
      %s76 = sadd.s32 %s75, 1
      %p79 = scmp.eq.s32.totalorder %s20, 1
      %p80 = scmp.ne.s32.totalorder %s75, %s77
      %p81 = scmp.eq.s32.totalorder %s20, 0
      %p82 = por %p80, %p81
      %p83 = scmp.ne.s32.totalorder %s75, %s77
      %p84 = scmp.eq.s32.totalorder %s25, 1
      %p85 = por %p83, %p84
      %p86 = scmp.ne.s32.totalorder %s77, %s78
      %p87 = scmp.eq.s32.totalorder %s25, 0
      %p88 = por %p86, %p87
      %p89 = scmp.ne.s32.totalorder %s77, %s78
      %p90 = scmp.eq.s32.totalorder %s26, 1
      %p91 = por %p89, %p90
      %p93 = scmp.ne.s32.totalorder %s78, %s92
      %p94 = scmp.eq.s32.totalorder %s26, 0
      %p95 = por %p93, %p94
      %s97 = sadd.s32 %s96, 1
      %p100 = scmp.eq.s32.totalorder %s20, 1
      %p101 = scmp.ne.s32.totalorder %s96, %s98
      %p102 = scmp.eq.s32.totalorder %s20, 0
      %p103 = por %p101, %p102
      %p104 = scmp.ne.s32.totalorder %s96, %s98
      %p105 = scmp.eq.s32.totalorder %s25, 1
      %p106 = por %p104, %p105
      %p107 = scmp.ne.s32.totalorder %s98, %s99
      %p108 = scmp.eq.s32.totalorder %s25, 0
      %p109 = por %p107, %p108
      %p110 = scmp.ne.s32.totalorder %s98, %s99
      %p111 = scmp.eq.s32.totalorder %s26, 1
      %p112 = por %p110, %p111
      %p114 = scmp.ne.s32.totalorder %s99, %s113
      %p115 = scmp.eq.s32.totalorder %s26, 0
      %p116 = por %p114, %p115
      %s118 = sadd.s32 %s117, 1
      %p121 = scmp.eq.s32.totalorder %s20, 1
      %p122 = scmp.ne.s32.totalorder %s117, %s119
      %p123 = scmp.eq.s32.totalorder %s20, 0
      %p124 = por %p122, %p123
      %p125 = scmp.ne.s32.totalorder %s117, %s119
      %p126 = scmp.eq.s32.totalorder %s25, 1
      %p127 = por %p125, %p126
      %p128 = scmp.ne.s32.totalorder %s119, %s120
      %p129 = scmp.eq.s32.totalorder %s25, 0
      %p130 = por %p128, %p129
      %p131 = scmp.ne.s32.totalorder %s119, %s120
      %p132 = scmp.eq.s32.totalorder %s26, 1
      %p133 = por %p131, %p132
      %p135 = scmp.ne.s32.totalorder %s120, %s134
      %p136 = scmp.eq.s32.totalorder %s26, 0
      %p137 = por %p135, %p136
      %s139 = sadd.s32 %s138, 1
      %p142 = scmp.eq.s32.totalorder %s20, 1
      %p143 = scmp.ne.s32.totalorder %s138, %s140
      %p144 = scmp.eq.s32.totalorder %s20, 0
      %p145 = por %p143, %p144
      %p146 = scmp.ne.s32.totalorder %s138, %s140
      %p147 = scmp.eq.s32.totalorder %s25, 1
      %p148 = por %p146, %p147
      %p149 = scmp.ne.s32.totalorder %s140, %s141
      %p150 = scmp.eq.s32.totalorder %s25, 0
      %p151 = por %p149, %p150
      %p152 = scmp.ne.s32.totalorder %s140, %s141
      %p153 = scmp.eq.s32.totalorder %s26, 1
      %p154 = por %p152, %p153
      %p156 = scmp.ne.s32.totalorder %s141, %s155
      %p157 = scmp.eq.s32.totalorder %s26, 0
      %p158 = por %p156, %p157
      %s160 = sadd.s32 %s159, 1
      %p163 = scmp.eq.s32.totalorder %s20, 1
      %p164 = scmp.ne.s32.totalorder %s159, %s161
      %p165 = scmp.eq.s32.totalorder %s20, 0
      %p166 = por %p164, %p165
      %p167 = scmp.ne.s32.totalorder %s159, %s161
      %p168 = scmp.eq.s32.totalorder %s25, 1
      %p169 = por %p167, %p168
      %p170 = scmp.ne.s32.totalorder %s161, %s162
      %p171 = scmp.eq.s32.totalorder %s25, 0
      %p172 = por %p170, %p171
      %p173 = scmp.ne.s32.totalorder %s161, %s162
      %p174 = scmp.eq.s32.totalorder %s26, 1
      %p175 = por %p173, %p174
      %p177 = scmp.ne.s32.totalorder %s162, %s176
      %p178 = scmp.eq.s32.totalorder %s26, 0
      %p179 = por %p177, %p178
      %s180 = ssub.s32 %s20, %s27
      %p181 = scmp.eq.s32.totalorder %s180, 0
      %s183 = sadd.s32 %s182, 1
      %s184 = scalar_select %p181, %s182, %s183
      %p187 = pneg %p181
      %p188 = scmp.eq.s32.totalorder %s20, 1
      %p189 = por %p187, %p188
      %p190 = scmp.ne.s32.totalorder %s182, %s185
      %p191 = scmp.eq.s32.totalorder %s20, 0
      %p192 = por %p190, %p191
      %p193 = scmp.ne.s32.totalorder %s182, %s185
      %p194 = scmp.eq.s32.totalorder %s25, 1
      %p195 = por %p193, %p194
      %p196 = scmp.ne.s32.totalorder %s185, %s186
      %p197 = scmp.eq.s32.totalorder %s25, 0
      %p198 = por %p196, %p197
      %p199 = scmp.ne.s32.totalorder %s185, %s186
      %p200 = scmp.eq.s32.totalorder %s26, 1
      %p201 = por %p199, %p200
      %p203 = scmp.ne.s32.totalorder %s186, %s202
      %p204 = scmp.eq.s32.totalorder %s26, 0
      %p205 = por %p203, %p204
      %p206 = scmp.le.s32.totalorder 1, %s20
      %p207 = scmp.lt.s32.totalorder %s20, 3
      %p208 = pnand %p206, %p207
      %p209 = pneg %p208
      // Predicated region
      $region9: #{tpu_custom_call.1} parent=5 // pred_check
        _
      $region10: #{tpu_custom_call.1} parent=5 // pred_check_branch
        %211 = sbr.rel (%p208) target = $region12
      $region11: #{tpu_custom_call.1} parent=5 // pred_region
        %s212 = ssub.s32 %s20, 1
        // Predicated region
        $region13: #{tpu_custom_call.1} parent=11 // pred_check
          %p213 = pneg %p67
        $region14: #{tpu_custom_call.1} parent=11 // pred_check_branch
          %215 = sbr.rel (%p213) target = $region16
        $region15: #{tpu_custom_call.1} parent=11 // pred_region
          _
        $region16: #{tpu_custom_call.1} parent=11 // pred_fallthru
          _
        // Predicated region
        $region17: #{tpu_custom_call.1} parent=11 // pred_check
          %p216 = pneg %p88
        $region18: #{tpu_custom_call.1} parent=11 // pred_check_branch
          %218 = sbr.rel (%p216) target = $region20
        $region19: #{tpu_custom_call.1} parent=11 // pred_region
          _
        $region20: #{tpu_custom_call.1} parent=11 // pred_fallthru
          _
        // Predicated region
        $region21: #{tpu_custom_call.1} parent=11 // pred_check
          %p219 = pneg %p109
        $region22: #{tpu_custom_call.1} parent=11 // pred_check_branch
          %221 = sbr.rel (%p219) target = $region24
        $region23: #{tpu_custom_call.1} parent=11 // pred_region
          %s223 = ssub.s32 5120, 5120
          %224 = vsyncadd [#allocation6], %s223
          %s225 = sshll.u32 [#allocation5], 4
          %s226 = int_to_ptr.vmem [resolvable:$true] %s225
          %231 = dma.hbm_to_vmem [thread:$0]  %s3, 5120, %s226, [#allocation6], 64, 64, 4
        $region24: #{tpu_custom_call.1} parent=11 // pred_fallthru
          _
        // Predicated region
        $region25: #{tpu_custom_call.1} parent=11 // pred_check
          %p232 = pneg %p130
        $region26: #{tpu_custom_call.1} parent=11 // pred_check_branch
          %234 = sbr.rel (%p232) target = $region28
        $region27: #{tpu_custom_call.1} parent=11 // pred_region
          _
        $region28: #{tpu_custom_call.1} parent=11 // pred_fallthru
          _
        // Predicated region
        $region29: #{tpu_custom_call.1} parent=11 // pred_check
          %p235 = pneg %p151
        $region30: #{tpu_custom_call.1} parent=11 // pred_check_branch
          %237 = sbr.rel (%p235) target = $region32
        $region31: #{tpu_custom_call.1} parent=11 // pred_region
          _
        $region32: #{tpu_custom_call.1} parent=11 // pred_fallthru
          _
        // Predicated region
        $region33: #{tpu_custom_call.1} parent=11 // pred_check
          %p238 = pneg %p172
        $region34: #{tpu_custom_call.1} parent=11 // pred_check_branch
          %240 = sbr.rel (%p238) target = $region36
        $region35: #{tpu_custom_call.1} parent=11 // pred_region
          %s242 = ssub.s32 5120, 5120
          %243 = vsyncadd [#allocation6], %s242
          %s244 = sshll.u32 [#allocation7], 4
          %s245 = int_to_ptr.vmem [resolvable:$true] %s244
          %250 = dma.hbm_to_vmem [thread:$0]  %s6, 5120, %s245, [#allocation6], 64, 64, 4
        $region36: #{tpu_custom_call.1} parent=11 // pred_fallthru
          _
      $region12: #{tpu_custom_call.1} parent=5 // pred_fallthru
        _
      %p251 = scmp.lt.s32.totalorder %s20, 2
      // Predicated region
      $region37: #{tpu_custom_call.1} parent=5 // pred_check
        %p252 = pneg %p251
      $region38: #{tpu_custom_call.1} parent=5 // pred_check_branch
        %254 = sbr.rel (%p252) target = $region40
      $region39: #{tpu_custom_call.1} parent=5 // pred_region
        // Predicated region
        $region41: #{tpu_custom_call.1} parent=39 // pred_check
          %p255 = pneg %p40
        $region42: #{tpu_custom_call.1} parent=39 // pred_check_branch
          %257 = sbr.rel (%p255) target = $region44
        $region43: #{tpu_custom_call.1} parent=39 // pred_region
          %s258 = sand.u32 %s30, 1
          %s259 = scalar_lea.sflag [#allocation3], %s258
          %s260 = sand.u32 %s30, 1
          %s261 = smul.addr %s260, 128
          %s262 = scalar_lea.vmem [#allocation2], %s261
          %s264 = ssub.s32 2048, 2048
          %265 = vsyncadd %s259, %s264
          %s266 = smul.addr %s20, 16
          %s267 = smul.addr %s266, 128
          %s268 = scalar_lea.hbm %s0, %s267
          %s269 = sshll.u32 %s262, 4
          %s270 = int_to_ptr.vmem [resolvable:$true] %s269
          %275 = dma.hbm_to_vmem [thread:$0]  %s268, 2048, %s270, %s259, 128, 128, 8
        $region44: #{tpu_custom_call.1} parent=39 // pred_fallthru
          _
      $region40: #{tpu_custom_call.1} parent=5 // pred_fallthru
        _
      %p276 = scmp.le.s32.totalorder 1, %s20
      %p277 = scmp.lt.s32.totalorder %s20, 3
      %p278 = pnand %p276, %p277
      %p279 = pneg %p278
      // Predicated region
      $region45: #{tpu_custom_call.1} parent=5 // pred_check
        _
      $region46: #{tpu_custom_call.1} parent=5 // pred_check_branch
        %281 = sbr.rel (%p278) target = $region48
      $region47: #{tpu_custom_call.1} parent=5 // pred_region
        %s282 = ssub.s32 %s20, 1
        %s283 = sand.u32 %s33, 1
        %s284 = scalar_lea.sflag [#allocation3], %s283
        %s285 = sand.u32 %s33, 1
        %s286 = smul.addr %s285, 128
        %s287 = scalar_lea.vmem [#allocation2], %s286
        // Predicated region
        $region49: #{tpu_custom_call.1} parent=47 // pred_check
          %p288 = pneg %p46
        $region50: #{tpu_custom_call.1} parent=47 // pred_check_branch
          %290 = sbr.rel (%p288) target = $region52
        $region51: #{tpu_custom_call.1} parent=47 // pred_region
          %291 = dma.done %s284, 2048
        $region52: #{tpu_custom_call.1} parent=47 // pred_fallthru
          _
        // Predicated region
        $region53: #{tpu_custom_call.1} parent=47 // pred_check
          %p292 = pneg %p109
        $region54: #{tpu_custom_call.1} parent=47 // pred_check_branch
          %294 = sbr.rel (%p292) target = $region56
        $region55: #{tpu_custom_call.1} parent=47 // pred_region
          %295 = dma.done [#allocation6], 5120
        $region56: #{tpu_custom_call.1} parent=47 // pred_fallthru
          _
        // Predicated region
        $region57: #{tpu_custom_call.1} parent=47 // pred_check
          %p296 = pneg %p172
        $region58: #{tpu_custom_call.1} parent=47 // pred_check_branch
          %298 = sbr.rel (%p296) target = $region60
        $region59: #{tpu_custom_call.1} parent=47 // pred_region
          %299 = dma.done [#allocation6], 5120
        $region60: #{tpu_custom_call.1} parent=47 // pred_fallthru
          _
        %s300 = sand.u32 %s33, 1
        %s301 = scalar_lea.sflag [#allocation3], %s300
        %s302 = sand.u32 %s33, 1
        %s303 = smul.addr %s302, 128
        %s304 = scalar_lea.vmem [#allocation2], %s303
        %p305 = pneg %p46
        %p306 = pneg %p43
        %p307 = pneg %p67
        %p308 = pneg %p64
        %p309 = pneg %p88
        %p310 = pneg %p85
        %p311 = pneg %p109
        %p312 = pneg %p106
        %p313 = pneg %p130
        %p314 = pneg %p127
        %p315 = pneg %p151
        %p316 = pneg %p148
        %p317 = pneg %p172
        %p318 = pneg %p169
        %p319 = pneg %p198
        %p320 = pneg %p195
        %s321 = sand.u32 %s185, 1
        %s322 = scalar_lea.sflag [#allocation4], %s321
        %s323 = sand.u32 %s185, 1
        %s324 = smul.addr %s323, 128
        %s325 = scalar_lea.vmem [#allocation8], %s324
        %v327 = vld [vmem:[%s287] sm:$0xff]
        %v328 = vld [vmem:[%s287 + $0x8] sm:$0xff]
        %v329 = vld [vmem:[%s287 + $0x10] sm:$0xff]
        %v330 = vld [vmem:[%s287 + $0x18] sm:$0xff]
        %v331 = vld [vmem:[%s287 + $0x20] sm:$0xff]
        %v332 = vld [vmem:[%s287 + $0x28] sm:$0xff]
        %v333 = vld [vmem:[%s287 + $0x30] sm:$0xff]
        %v334 = vld [vmem:[%s287 + $0x38] sm:$0xff]
        %v335 = vld [vmem:[%s287 + $0x40] sm:$0xff]
        %v336 = vld [vmem:[%s287 + $0x48] sm:$0xff]
        %v337 = vld [vmem:[%s287 + $0x50] sm:$0xff]
        %v338 = vld [vmem:[%s287 + $0x58] sm:$0xff]
        %v339 = vld [vmem:[%s287 + $0x60] sm:$0xff]
        %v340 = vld [vmem:[%s287 + $0x68] sm:$0xff]
        %v341 = vld [vmem:[%s287 + $0x70] sm:$0xff]
        %v342 = vld [vmem:[%s287 + $0x78] sm:$0xff]
        %v343 = vld [vmem:[%s1] sm:$0x1]
        %v345 = vlaneseq
        %v346 = vshrl.u32 %v345, 7
        %v347 = vsub.s32 0, %v346
        %v348 = vrot.slane %v343, %v347
        %v350 = vmul.f32 %v327, %v348
        %v351 = vmul.f32 %v328, %v348
        %v352 = vmul.f32 %v329, %v348
        %v353 = vmul.f32 %v330, %v348
        %v354 = vmul.f32 %v331, %v348
        %v355 = vmul.f32 %v332, %v348
        %v356 = vmul.f32 %v333, %v348
        %v357 = vmul.f32 %v334, %v348
        %v358 = vmul.f32 %v335, %v348
        %v359 = vmul.f32 %v336, %v348
        %v360 = vmul.f32 %v337, %v348
        %v361 = vmul.f32 %v338, %v348
        %v362 = vmul.f32 %v339, %v348
        %v363 = vmul.f32 %v340, %v348
        %v364 = vmul.f32 %v341, %v348
        %v365 = vmul.f32 %v342, %v348
        %v366 = vld [vmem:[%s2] sm:$0x1]
        %v368 = vlaneseq
        %v369 = vshrl.u32 %v368, 7
        %v370 = vsub.s32 0, %v369
        %v371 = vrot.slane %v366, %v370
        %v373 = vadd.f32 %v350, %v371
        %v374 = vadd.f32 %v351, %v371
        %v375 = vadd.f32 %v352, %v371
        %v376 = vadd.f32 %v353, %v371
        %v377 = vadd.f32 %v354, %v371
        %v378 = vadd.f32 %v355, %v371
        %v379 = vadd.f32 %v356, %v371
        %v380 = vadd.f32 %v357, %v371
        %v381 = vadd.f32 %v358, %v371
        %v382 = vadd.f32 %v359, %v371
        %v383 = vadd.f32 %v360, %v371
        %v384 = vadd.f32 %v361, %v371
        %v385 = vadd.f32 %v362, %v371
        %v386 = vadd.f32 %v363, %v371
        %v387 = vadd.f32 %v364, %v371
        %v388 = vadd.f32 %v365, %v371
        %v389 = vmax.f32 %v373, 0.0
        %v390 = vmax.f32 %v374, 0.0
        %v391 = vmax.f32 %v375, 0.0
        %v392 = vmax.f32 %v376, 0.0
        %v393 = vmax.f32 %v377, 0.0
        %v394 = vmax.f32 %v378, 0.0
        %v395 = vmax.f32 %v379, 0.0
        %v396 = vmax.f32 %v380, 0.0
        %v397 = vmax.f32 %v381, 0.0
        %v398 = vmax.f32 %v382, 0.0
        %v399 = vmax.f32 %v383, 0.0
        %v400 = vmax.f32 %v384, 0.0
        %v401 = vmax.f32 %v385, 0.0
        %v402 = vmax.f32 %v386, 0.0
        %v403 = vmax.f32 %v387, 0.0
        %v404 = vmax.f32 %v388, 0.0
        %v405 = vrot.slane %v389, 6
        %v406 = vrot.slane %v390, 6
        %v407 = vrot.slane %v391, 6
        %v408 = vrot.slane %v392, 6
        %v409 = vrot.slane %v393, 6
        %v410 = vrot.slane %v394, 6
        %v411 = vrot.slane %v395, 6
        %v412 = vrot.slane %v396, 6
        %v413 = vrot.slane %v397, 6
        %v414 = vrot.slane %v398, 6
        %v415 = vrot.slane %v399, 6
        %v416 = vrot.slane %v400, 6
        %v417 = vrot.slane %v401, 6
        %v418 = vrot.slane %v402, 6
        %v419 = vrot.slane %v403, 6
        %v420 = vrot.slane %v404, 6
        %v421 = vlaneseq
        %v422 = vshrl.u32 %v421, 7
        %vm423 = vcmp.lt.s32.totalorder %v422, 2
        %v424 = vsel %vm423, %v419, %v420
        %v425 = vsel %vm423, %v418, %v419
        %v426 = vsel %vm423, %v417, %v418
        %v427 = vsel %vm423, %v416, %v417
        %v428 = vsel %vm423, %v415, %v416
        %v429 = vsel %vm423, %v414, %v415
        %v430 = vsel %vm423, %v413, %v414
        %v431 = vsel %vm423, %v412, %v413
        %v432 = vsel %vm423, %v411, %v412
        %v433 = vsel %vm423, %v410, %v411
        %v434 = vsel %vm423, %v409, %v410
        %v435 = vsel %vm423, %v408, %v409
        %v436 = vsel %vm423, %v407, %v408
        %v437 = vsel %vm423, %v406, %v407
        %v438 = vsel %vm423, %v405, %v406
        %v439 = vsel %vm423, %v420, %v405
        %v440 = vrot.slane %v389, 7
        %v441 = vrot.slane %v390, 7
        %v442 = vrot.slane %v391, 7
        %v443 = vrot.slane %v392, 7
        %v444 = vrot.slane %v393, 7
        %v445 = vrot.slane %v394, 7
        %v446 = vrot.slane %v395, 7
        %v447 = vrot.slane %v396, 7
        %v448 = vrot.slane %v397, 7
        %v449 = vrot.slane %v398, 7
        %v450 = vrot.slane %v399, 7
        %v451 = vrot.slane %v400, 7
        %v452 = vrot.slane %v401, 7
        %v453 = vrot.slane %v402, 7
        %v454 = vrot.slane %v403, 7
        %v455 = vrot.slane %v404, 7
        %vm456 = vcmp.lt.s32.totalorder %v422, 1
        %v457 = vsel %vm456, %v454, %v455
        %v458 = vsel %vm456, %v453, %v454
        %v459 = vsel %vm456, %v452, %v453
        %v460 = vsel %vm456, %v451, %v452
        %v461 = vsel %vm456, %v450, %v451
        %v462 = vsel %vm456, %v449, %v450
        %v463 = vsel %vm456, %v448, %v449
        %v464 = vsel %vm456, %v447, %v448
        %v465 = vsel %vm456, %v446, %v447
        %v466 = vsel %vm456, %v445, %v446
        %v467 = vsel %vm456, %v444, %v445
        %v468 = vsel %vm456, %v443, %v444
        %v469 = vsel %vm456, %v442, %v443
        %v470 = vsel %vm456, %v441, %v442
        %v471 = vsel %vm456, %v440, %v441
        %v472 = vsel %vm456, %v455, %v440
        %v473 = vrot.slane %v389, 1
        %v474 = vrot.slane %v390, 1
        %v475 = vrot.slane %v391, 1
        %v476 = vrot.slane %v392, 1
        %v477 = vrot.slane %v393, 1
        %v478 = vrot.slane %v394, 1
        %v479 = vrot.slane %v395, 1
        %v480 = vrot.slane %v396, 1
        %v481 = vrot.slane %v397, 1
        %v482 = vrot.slane %v398, 1
        %v483 = vrot.slane %v399, 1
        %v484 = vrot.slane %v400, 1
        %v485 = vrot.slane %v401, 1
        %v486 = vrot.slane %v402, 1
        %v487 = vrot.slane %v403, 1
        %v488 = vrot.slane %v404, 1
        %vm489 = vcmp.lt.s32.totalorder %v422, 7
        %v490 = vsel %vm489, %v487, %v488
        %v491 = vsel %vm489, %v486, %v487
        %v492 = vsel %vm489, %v485, %v486
        %v493 = vsel %vm489, %v484, %v485
        %v494 = vsel %vm489, %v483, %v484
        %v495 = vsel %vm489, %v482, %v483
        %v496 = vsel %vm489, %v481, %v482
        %v497 = vsel %vm489, %v480, %v481
        %v498 = vsel %vm489, %v479, %v480
        %v499 = vsel %vm489, %v478, %v479
        %v500 = vsel %vm489, %v477, %v478
        %v501 = vsel %vm489, %v476, %v477
        %v502 = vsel %vm489, %v475, %v476
        %v503 = vsel %vm489, %v474, %v475
        %v504 = vsel %vm489, %v473, %v474
        %v505 = vsel %vm489, %v488, %v473
        %v506 = vrot.slane %v389, 2
        %v507 = vrot.slane %v390, 2
        %v508 = vrot.slane %v391, 2
        %v509 = vrot.slane %v392, 2
        %v510 = vrot.slane %v393, 2
        %v511 = vrot.slane %v394, 2
        %v512 = vrot.slane %v395, 2
        %v513 = vrot.slane %v396, 2
        %v514 = vrot.slane %v397, 2
        %v515 = vrot.slane %v398, 2
        %v516 = vrot.slane %v399, 2
        %v517 = vrot.slane %v400, 2
        %v518 = vrot.slane %v401, 2
        %v519 = vrot.slane %v402, 2
        %v520 = vrot.slane %v403, 2
        %v521 = vrot.slane %v404, 2
        %vm522 = vcmp.lt.s32.totalorder %v422, 6
        %v523 = vsel %vm522, %v520, %v521
        %v524 = vsel %vm522, %v519, %v520
        %v525 = vsel %vm522, %v518, %v519
        %v526 = vsel %vm522, %v517, %v518
        %v527 = vsel %vm522, %v516, %v517
        %v528 = vsel %vm522, %v515, %v516
        %v529 = vsel %vm522, %v514, %v515
        %v530 = vsel %vm522, %v513, %v514
        %v531 = vsel %vm522, %v512, %v513
        %v532 = vsel %vm522, %v511, %v512
        %v533 = vsel %vm522, %v510, %v511
        %v534 = vsel %vm522, %v509, %v510
        %v535 = vsel %vm522, %v508, %v509
        %v536 = vsel %vm522, %v507, %v508
        %v537 = vsel %vm522, %v506, %v507
        %v538 = vsel %vm522, %v521, %v506
        %v539 = vpack.c.bf16 %v438, %v439
        %v540 = vpack.c.bf16 %v471, %v472
        %v541 = vpack.c.bf16 %v390, %v389
        %v542 = vpack.c.bf16 %v503, %v504
        %v543 = vpack.c.bf16 %v536, %v537
        %v544 = vpack.c.bf16 %v436, %v437
        %v545 = vpack.c.bf16 %v469, %v470
        %v546 = vpack.c.bf16 %v392, %v391
        %v547 = vpack.c.bf16 %v501, %v502
        %v548 = vpack.c.bf16 %v534, %v535
        %v549 = vpack.c.bf16 %v434, %v435
        %v550 = vpack.c.bf16 %v467, %v468
        %v551 = vpack.c.bf16 %v394, %v393
        %v552 = vpack.c.bf16 %v499, %v500
        %v553 = vpack.c.bf16 %v532, %v533
        %v554 = vpack.c.bf16 %v432, %v433
        %v555 = vpack.c.bf16 %v465, %v466
        %v556 = vpack.c.bf16 %v396, %v395
        %v557 = vpack.c.bf16 %v497, %v498
        %v558 = vpack.c.bf16 %v530, %v531
        %v559 = vpack.c.bf16 %v430, %v431
        %v560 = vpack.c.bf16 %v463, %v464
        %v561 = vpack.c.bf16 %v398, %v397
        %v562 = vpack.c.bf16 %v495, %v496
        %v563 = vpack.c.bf16 %v528, %v529
        %v564 = vpack.c.bf16 %v428, %v429
        %v565 = vpack.c.bf16 %v461, %v462
        %v566 = vpack.c.bf16 %v400, %v399
        %v567 = vpack.c.bf16 %v493, %v494
        %v568 = vpack.c.bf16 %v526, %v527
        %v569 = vpack.c.bf16 %v426, %v427
        %v570 = vpack.c.bf16 %v459, %v460
        %v571 = vpack.c.bf16 %v402, %v401
        %v572 = vpack.c.bf16 %v491, %v492
        %v573 = vpack.c.bf16 %v524, %v525
        %v574 = vpack.c.bf16 %v424, %v425
        %v575 = vpack.c.bf16 %v457, %v458
        %v576 = vpack.c.bf16 %v404, %v403
        %v577 = vpack.c.bf16 %v505, %v490
        %v578 = vpack.c.bf16 %v538, %v523
        %v579 = vld [vmem:[#allocation5] sm:$0xf]
        %v580 = vld [vmem:[#allocation5 + $0x4] sm:$0xf]
        %v581 = vld [vmem:[#allocation5 + $0x8] sm:$0xf]
        %v582 = vld [vmem:[#allocation5 + $0xc] sm:$0xf]
        %v583 = vld [vmem:[#allocation5 + $0x10] sm:$0xf]
        %v584 = vld [vmem:[#allocation5 + $0x14] sm:$0xf]
        %v585 = vld [vmem:[#allocation5 + $0x18] sm:$0xf]
        %v586 = vld [vmem:[#allocation5 + $0x1c] sm:$0xf]
        %v587 = vld [vmem:[#allocation5 + $0x20] sm:$0xf]
        %v588 = vld [vmem:[#allocation5 + $0x24] sm:$0xf]
        %v589 = vld [vmem:[#allocation5 + $0x28] sm:$0xf]
        %v590 = vld [vmem:[#allocation5 + $0x2c] sm:$0xf]
        %v591 = vld [vmem:[#allocation5 + $0x30] sm:$0xf]
        %v592 = vld [vmem:[#allocation5 + $0x34] sm:$0xf]
        %v593 = vld [vmem:[#allocation5 + $0x38] sm:$0xf]
        %v594 = vld [vmem:[#allocation5 + $0x3c] sm:$0xf]
        %v595 = vld [vmem:[#allocation5 + $0x40] sm:$0xf]
        %v596 = vld [vmem:[#allocation5 + $0x44] sm:$0xf]
        %v597 = vld [vmem:[#allocation5 + $0x48] sm:$0xf]
        %v598 = vld [vmem:[#allocation5 + $0x4c] sm:$0xf]
        %v599 = vld [vmem:[#allocation5 + $0x50] sm:$0xf]
        %v600 = vld [vmem:[#allocation5 + $0x54] sm:$0xf]
        %v601 = vld [vmem:[#allocation5 + $0x58] sm:$0xf]
        %v602 = vld [vmem:[#allocation5 + $0x5c] sm:$0xf]
        %v603 = vld [vmem:[#allocation5 + $0x60] sm:$0xf]
        %v604 = vld [vmem:[#allocation5 + $0x64] sm:$0xf]
        %v605 = vld [vmem:[#allocation5 + $0x68] sm:$0xf]
        %v606 = vld [vmem:[#allocation5 + $0x6c] sm:$0xf]
        %v607 = vld [vmem:[#allocation5 + $0x70] sm:$0xf]
        %v608 = vld [vmem:[#allocation5 + $0x74] sm:$0xf]
        %v609 = vld [vmem:[#allocation5 + $0x78] sm:$0xf]
        %v610 = vld [vmem:[#allocation5 + $0x7c] sm:$0xf]
        %v611 = vld [vmem:[#allocation5 + $0x80] sm:$0xf]
        %v612 = vld [vmem:[#allocation5 + $0x84] sm:$0xf]
        %v613 = vld [vmem:[#allocation5 + $0x88] sm:$0xf]
        %v614 = vld [vmem:[#allocation5 + $0x8c] sm:$0xf]
        %v615 = vld [vmem:[#allocation5 + $0x90] sm:$0xf]
        %v616 = vld [vmem:[#allocation5 + $0x94] sm:$0xf]
        %v617 = vld [vmem:[#allocation5 + $0x98] sm:$0xf]
        %v618 = vld [vmem:[#allocation5 + $0x9c] sm:$0xf]
        %v619 = vld [vmem:[#allocation5 + $0xa0] sm:$0xf]
        %v620 = vld [vmem:[#allocation5 + $0xa4] sm:$0xf]
        %v621 = vld [vmem:[#allocation5 + $0xa8] sm:$0xf]
        %v622 = vld [vmem:[#allocation5 + $0xac] sm:$0xf]
        %v623 = vld [vmem:[#allocation5 + $0xb0] sm:$0xf]
        %v624 = vld [vmem:[#allocation5 + $0xb4] sm:$0xf]
        %v625 = vld [vmem:[#allocation5 + $0xb8] sm:$0xf]
        %v626 = vld [vmem:[#allocation5 + $0xbc] sm:$0xf]
        %v627 = vld [vmem:[#allocation5 + $0xc0] sm:$0xf]
        %v628 = vld [vmem:[#allocation5 + $0xc4] sm:$0xf]
        %v629 = vld [vmem:[#allocation5 + $0xc8] sm:$0xf]
        %v630 = vld [vmem:[#allocation5 + $0xcc] sm:$0xf]
        %v631 = vld [vmem:[#allocation5 + $0xd0] sm:$0xf]
        %v632 = vld [vmem:[#allocation5 + $0xd4] sm:$0xf]
        %v633 = vld [vmem:[#allocation5 + $0xd8] sm:$0xf]
        %v634 = vld [vmem:[#allocation5 + $0xdc] sm:$0xf]
        %v635 = vld [vmem:[#allocation5 + $0xe0] sm:$0xf]
        %v636 = vld [vmem:[#allocation5 + $0xe4] sm:$0xf]
        %v637 = vld [vmem:[#allocation5 + $0xe8] sm:$0xf]
        %v638 = vld [vmem:[#allocation5 + $0xec] sm:$0xf]
        %v639 = vld [vmem:[#allocation5 + $0xf0] sm:$0xf]
        %v640 = vld [vmem:[#allocation5 + $0xf4] sm:$0xf]
        %v641 = vld [vmem:[#allocation5 + $0xf8] sm:$0xf]
        %v642 = vld [vmem:[#allocation5 + $0xfc] sm:$0xf]
        %v643 = vld [vmem:[#allocation5 + $0x100] sm:$0xf]
        %v644 = vld [vmem:[#allocation5 + $0x104] sm:$0xf]
        %v645 = vld [vmem:[#allocation5 + $0x108] sm:$0xf]
        %v646 = vld [vmem:[#allocation5 + $0x10c] sm:$0xf]
        %v647 = vld [vmem:[#allocation5 + $0x110] sm:$0xf]
        %v648 = vld [vmem:[#allocation5 + $0x114] sm:$0xf]
        %v649 = vld [vmem:[#allocation5 + $0x118] sm:$0xf]
        %v650 = vld [vmem:[#allocation5 + $0x11c] sm:$0xf]
        %v651 = vld [vmem:[#allocation5 + $0x120] sm:$0xf]
        %v652 = vld [vmem:[#allocation5 + $0x124] sm:$0xf]
        %v653 = vld [vmem:[#allocation5 + $0x128] sm:$0xf]
        %v654 = vld [vmem:[#allocation5 + $0x12c] sm:$0xf]
        %v655 = vld [vmem:[#allocation5 + $0x130] sm:$0xf]
        %v656 = vld [vmem:[#allocation5 + $0x134] sm:$0xf]
        %v657 = vld [vmem:[#allocation5 + $0x138] sm:$0xf]
        %v658 = vld [vmem:[#allocation5 + $0x13c] sm:$0xf]
        %v739 = vunpack.c.l.b16 %v579
        %v740 = vunpack.c.l.b16 %v580
        %v741 = vunpack.c.l.b16 %v581
        %v742 = vunpack.c.l.b16 %v582
        %v743 = vunpack.c.l.b16 %v583
        %v744 = vunpack.c.l.b16 %v584
        %v745 = vunpack.c.l.b16 %v585
        %v746 = vunpack.c.l.b16 %v586
        %v747 = vunpack.c.l.b16 %v587
        %v748 = vunpack.c.l.b16 %v588
        %v749 = vunpack.c.l.b16 %v589
        %v750 = vunpack.c.l.b16 %v590
        %v751 = vunpack.c.l.b16 %v591
        %v752 = vunpack.c.l.b16 %v592
        %v753 = vunpack.c.l.b16 %v593
        %v754 = vunpack.c.l.b16 %v594
        %v755 = vunpack.c.l.b16 %v595
        %v756 = vunpack.c.l.b16 %v596
        %v757 = vunpack.c.l.b16 %v597
        %v758 = vunpack.c.l.b16 %v598
        %v759 = vunpack.c.l.b16 %v599
        %v760 = vunpack.c.l.b16 %v600
        %v761 = vunpack.c.l.b16 %v601
        %v762 = vunpack.c.l.b16 %v602
        %v763 = vunpack.c.l.b16 %v603
        %v764 = vunpack.c.l.b16 %v604
        %v765 = vunpack.c.l.b16 %v605
        %v766 = vunpack.c.l.b16 %v606
        %v767 = vunpack.c.l.b16 %v607
        %v768 = vunpack.c.l.b16 %v608
        %v769 = vunpack.c.l.b16 %v609
        %v770 = vunpack.c.l.b16 %v610
        %v771 = vunpack.c.l.b16 %v611
        %v772 = vunpack.c.l.b16 %v612
        %v773 = vunpack.c.l.b16 %v613
        %v774 = vunpack.c.l.b16 %v614
        %v775 = vunpack.c.l.b16 %v615
        %v776 = vunpack.c.l.b16 %v616
        %v777 = vunpack.c.l.b16 %v617
        %v778 = vunpack.c.l.b16 %v618
        %v779 = vunpack.c.l.b16 %v619
        %v780 = vunpack.c.l.b16 %v620
        %v781 = vunpack.c.l.b16 %v621
        %v782 = vunpack.c.l.b16 %v622
        %v783 = vunpack.c.l.b16 %v623
        %v784 = vunpack.c.l.b16 %v624
        %v785 = vunpack.c.l.b16 %v625
        %v786 = vunpack.c.l.b16 %v626
        %v787 = vunpack.c.l.b16 %v627
        %v788 = vunpack.c.l.b16 %v628
        %v789 = vunpack.c.l.b16 %v629
        %v790 = vunpack.c.l.b16 %v630
        %v791 = vunpack.c.l.b16 %v631
        %v792 = vunpack.c.l.b16 %v632
        %v793 = vunpack.c.l.b16 %v633
        %v794 = vunpack.c.l.b16 %v634
        %v795 = vunpack.c.l.b16 %v635
        %v796 = vunpack.c.l.b16 %v636
        %v797 = vunpack.c.l.b16 %v637
        %v798 = vunpack.c.l.b16 %v638
        %v799 = vunpack.c.l.b16 %v639
        %v800 = vunpack.c.l.b16 %v640
        %v801 = vunpack.c.l.b16 %v641
        %v802 = vunpack.c.l.b16 %v642
        %v803 = vunpack.c.l.b16 %v643
        %v804 = vunpack.c.l.b16 %v644
        %v805 = vunpack.c.l.b16 %v645
        %v806 = vunpack.c.l.b16 %v646
        %v807 = vunpack.c.l.b16 %v647
        %v808 = vunpack.c.l.b16 %v648
        %v809 = vunpack.c.l.b16 %v649
        %v810 = vunpack.c.l.b16 %v650
        %v811 = vunpack.c.l.b16 %v651
        %v812 = vunpack.c.l.b16 %v652
        %v813 = vunpack.c.l.b16 %v653
        %v814 = vunpack.c.l.b16 %v654
        %v815 = vunpack.c.l.b16 %v655
        %v816 = vunpack.c.l.b16 %v656
        %v817 = vunpack.c.l.b16 %v657
        %v818 = vunpack.c.l.b16 %v658
        %v819 = vpack.c.b16 %v740, %v739
        %v820 = vpack.c.b16 %v742, %v741
        %v821 = vpack.c.b16 %v744, %v743
        %v822 = vpack.c.b16 %v746, %v745
        %v823 = vpack.c.b16 %v748, %v747
        %v824 = vpack.c.b16 %v750, %v749
        %v825 = vpack.c.b16 %v752, %v751
        %v826 = vpack.c.b16 %v754, %v753
        %v827 = vpack.c.b16 %v756, %v755
        %v828 = vpack.c.b16 %v758, %v757
        %v829 = vpack.c.b16 %v760, %v759
        %v830 = vpack.c.b16 %v762, %v761
        %v831 = vpack.c.b16 %v764, %v763
        %v832 = vpack.c.b16 %v766, %v765
        %v833 = vpack.c.b16 %v768, %v767
        %v834 = vpack.c.b16 %v770, %v769
        %v835 = vpack.c.b16 %v772, %v771
        %v836 = vpack.c.b16 %v774, %v773
        %v837 = vpack.c.b16 %v776, %v775
        %v838 = vpack.c.b16 %v778, %v777
        %v839 = vpack.c.b16 %v780, %v779
        %v840 = vpack.c.b16 %v782, %v781
        %v841 = vpack.c.b16 %v784, %v783
        %v842 = vpack.c.b16 %v786, %v785
        %v843 = vpack.c.b16 %v788, %v787
        %v844 = vpack.c.b16 %v790, %v789
        %v845 = vpack.c.b16 %v792, %v791
        %v846 = vpack.c.b16 %v794, %v793
        %v847 = vpack.c.b16 %v796, %v795
        %v848 = vpack.c.b16 %v798, %v797
        %v849 = vpack.c.b16 %v800, %v799
        %v850 = vpack.c.b16 %v802, %v801
        %v851 = vpack.c.b16 %v804, %v803
        %v852 = vpack.c.b16 %v806, %v805
        %v853 = vpack.c.b16 %v808, %v807
        %v854 = vpack.c.b16 %v810, %v809
        %v855 = vpack.c.b16 %v812, %v811
        %v856 = vpack.c.b16 %v814, %v813
        %v857 = vpack.c.b16 %v816, %v815
        %v858 = vpack.c.b16 %v818, %v817
        %899 = vmatprep.subr.bf16.mxu0 0
        %900 = vmatpush1.bf16.msra.mxu0 %v819
        %901 = vmatprep.subr.bf16.mxu0 0
        %902 = vmatpush1.bf16.msra.mxu0 %v820
        %903 = vmatprep.subr.bf16.mxu0 0
        %904 = vmatpush1.bf16.msra.mxu0 %v821
        %905 = vmatprep.subr.bf16.mxu0 0
        %906 = vmatpush1.bf16.msra.mxu0 %v822
        %907 = vmatprep.subr.bf16.mxu0 0
        %908 = vmatpush1.bf16.msra.mxu0 %v823
        %909 = vmatprep.subr.bf16.mxu0 0
        %910 = vmatpush1.bf16.msra.mxu0 %v824
        %911 = vmatprep.subr.bf16.mxu0 0
        %912 = vmatpush1.bf16.msra.mxu0 %v825
        %913 = vmatprep.subr.bf16.mxu0 0
        %914 = vmatpush1.bf16.msra.mxu0 %v826
        %915 = vmatprep.subr.bf16.mxu0 0
        %916 = vmatpush1.bf16.msra.mxu0 %v827
        %917 = vmatprep.subr.bf16.mxu0 0
        %918 = vmatpush1.bf16.msra.mxu0 %v828
        %919 = vmatprep.subr.bf16.mxu0 0
        %920 = vmatpush1.bf16.msra.mxu0 %v829
        %921 = vmatprep.subr.bf16.mxu0 0
        %922 = vmatpush1.bf16.msra.mxu0 %v830
        %923 = vmatprep.subr.bf16.mxu0 0
        %924 = vmatpush1.bf16.msra.mxu0 %v831
        %925 = vmatprep.subr.bf16.mxu0 0
        %926 = vmatpush1.bf16.msra.mxu0 %v832
        %927 = vmatprep.subr.bf16.mxu0 0
        %928 = vmatpush1.bf16.msra.mxu0 %v833
        %929 = vmatprep.subr.bf16.mxu0 0
        %930 = vmatpush1.bf16.msra.mxu0 %v834
        %931 = vmatprep.mubr.bf16.mxu0 %v540
        %932 = vmatmul.mubr.bf16.gmra.mrb[0].mxu0 %v539
        %v933 = vpop.f32.mrb[0].mxu0
        %v934 = vadd.f32 0.0, %v933
        %v935 = vpop.f32.mrb[0].mxu0
        %v936 = vpop.f32.mrb[0].mxu0
        %v937 = vadd.f32 0.0, %v936
        %v938 = vpop.f32.mrb[0].mxu0
        %939 = vmatprep.mubr.bf16.mxu0 %v545
        %940 = vmatmul.mubr.bf16.gmra.mrb[0].mxu0 %v544
        %v941 = vpop.f32.mrb[0].mxu0
        %v942 = vadd.f32 0.0, %v941
        %v943 = vpop.f32.mrb[0].mxu0
        %v944 = vpop.f32.mrb[0].mxu0
        %v945 = vadd.f32 0.0, %v944
        %v946 = vpop.f32.mrb[0].mxu0
        %947 = vmatprep.mubr.bf16.mxu0 %v550
        %948 = vmatmul.mubr.bf16.gmra.mrb[0].mxu0 %v549
        %v949 = vpop.f32.mrb[0].mxu0
        %v950 = vadd.f32 0.0, %v949
        %v951 = vpop.f32.mrb[0].mxu0
        %v952 = vpop.f32.mrb[0].mxu0
        %v953 = vadd.f32 0.0, %v952
        %v954 = vpop.f32.mrb[0].mxu0
        %955 = vmatprep.mubr.bf16.mxu0 %v555
        %956 = vmatmul.mubr.bf16.gmra.mrb[0].mxu0 %v554
        %v957 = vpop.f32.mrb[0].mxu0
        %v958 = vadd.f32 0.0, %v957
        %v959 = vpop.f32.mrb[0].mxu0
        %v960 = vpop.f32.mrb[0].mxu0
        %v961 = vadd.f32 0.0, %v960
        %v962 = vpop.f32.mrb[0].mxu0
        %963 = vmatprep.mubr.bf16.mxu0 %v560
        %964 = vmatmul.mubr.bf16.gmra.mrb[0].mxu0 %v559
        %v965 = vpop.f32.mrb[0].mxu0
        %v966 = vadd.f32 0.0, %v965
        %v967 = vpop.f32.mrb[0].mxu0
        %v968 = vpop.f32.mrb[0].mxu0
        %v969 = vadd.f32 0.0, %v968
        %v970 = vpop.f32.mrb[0].mxu0
        %971 = vmatprep.mubr.bf16.mxu0 %v565
        %972 = vmatmul.mubr.bf16.gmra.mrb[0].mxu0 %v564
        %v973 = vpop.f32.mrb[0].mxu0
        %v974 = vadd.f32 0.0, %v973
        %v975 = vpop.f32.mrb[0].mxu0
        %v976 = vpop.f32.mrb[0].mxu0
        %v977 = vadd.f32 0.0, %v976
        %v978 = vpop.f32.mrb[0].mxu0
        %979 = vmatprep.mubr.bf16.mxu0 %v570
        %980 = vmatmul.mubr.bf16.gmra.mrb[0].mxu0 %v569
        %v981 = vpop.f32.mrb[0].mxu0
        %v982 = vadd.f32 0.0, %v981
        %v983 = vpop.f32.mrb[0].mxu0
        %v984 = vpop.f32.mrb[0].mxu0
        %v985 = vadd.f32 0.0, %v984
        %v986 = vpop.f32.mrb[0].mxu0
        %987 = vmatprep.mubr.bf16.mxu0 %v575
        %988 = vmatmul.mubr.bf16.gmra.mrb[0].mxu0 %v574
        %v989 = vpop.f32.mrb[0].mxu0
        %v990 = vadd.f32 0.0, %v989
        %v991 = vpop.f32.mrb[0].mxu0
        %v992 = vpop.f32.mrb[0].mxu0
        %v993 = vadd.f32 0.0, %v992
        %v994 = vpop.f32.mrb[0].mxu0
        %995 = vdwg.mxu0
        %996 = vmatprep.subr.bf16.mxu0 0
        %997 = vmatpush1.bf16.msra.mxu0 %v835
        %998 = vmatprep.subr.bf16.mxu0 0
        %999 = vmatpush1.bf16.msra.mxu0 %v836
        %1000 = vmatprep.subr.bf16.mxu0 0
        %1001 = vmatpush1.bf16.msra.mxu0 %v837
        %1002 = vmatprep.subr.bf16.mxu0 0
        %1003 = vmatpush1.bf16.msra.mxu0 %v838
        %1004 = vmatprep.subr.bf16.mxu0 0
        %1005 = vmatpush1.bf16.msra.mxu0 %v839
        %1006 = vmatprep.subr.bf16.mxu0 0
        %1007 = vmatpush1.bf16.msra.mxu0 %v840
        %1008 = vmatprep.subr.bf16.mxu0 0
        %1009 = vmatpush1.bf16.msra.mxu0 %v841
        %1010 = vmatprep.subr.bf16.mxu0 0
        %1011 = vmatpush1.bf16.msra.mxu0 %v842
        %1012 = vmatprep.subr.bf16.mxu0 0
        %1013 = vmatpush1.bf16.msra.mxu0 %v843
        %1014 = vmatprep.subr.bf16.mxu0 0
        %1015 = vmatpush1.bf16.msra.mxu0 %v844
        %1016 = vmatprep.subr.bf16.mxu0 0
        %1017 = vmatpush1.bf16.msra.mxu0 %v845
        %1018 = vmatprep.subr.bf16.mxu0 0
        %1019 = vmatpush1.bf16.msra.mxu0 %v846
        %1020 = vmatprep.subr.bf16.mxu0 0
        %1021 = vmatpush1.bf16.msra.mxu0 %v847
        %1022 = vmatprep.subr.bf16.mxu0 0
        %1023 = vmatpush1.bf16.msra.mxu0 %v848
        %1024 = vmatprep.subr.bf16.mxu0 0
        %1025 = vmatpush1.bf16.msra.mxu0 %v849
        %1026 = vmatprep.subr.bf16.mxu0 0
        %1027 = vmatpush1.bf16.msra.mxu0 %v850
        %1028 = vmatprep.mubr.bf16.mxu0 %v542
        %1029 = vmatmul.mubr.bf16.gmra.mrb[0].mxu0 %v541
        %v1030 = vpop.f32.mrb[0].mxu0
        %v1031 = vadd.f32 %v934, %v1030
        %v1032 = vpop.f32.mrb[0].mxu0
        %v1033 = vpop.f32.mrb[0].mxu0
        %v1034 = vadd.f32 %v937, %v1033
        %v1035 = vpop.f32.mrb[0].mxu0
        %1036 = vmatprep.mubr.bf16.mxu0 %v547
        %1037 = vmatmul.mubr.bf16.gmra.mrb[0].mxu0 %v546
        %v1038 = vpop.f32.mrb[0].mxu0
        %v1039 = vadd.f32 %v942, %v1038
        %v1040 = vpop.f32.mrb[0].mxu0
        %v1041 = vpop.f32.mrb[0].mxu0
        %v1042 = vadd.f32 %v945, %v1041
        %v1043 = vpop.f32.mrb[0].mxu0
        %1044 = vmatprep.mubr.bf16.mxu0 %v552
        %1045 = vmatmul.mubr.bf16.gmra.mrb[0].mxu0 %v551
        %v1046 = vpop.f32.mrb[0].mxu0
        %v1047 = vadd.f32 %v950, %v1046
        %v1048 = vpop.f32.mrb[0].mxu0
        %v1049 = vpop.f32.mrb[0].mxu0
        %v1050 = vadd.f32 %v953, %v1049
        %v1051 = vpop.f32.mrb[0].mxu0
        %1052 = vmatprep.mubr.bf16.mxu0 %v557
        %1053 = vmatmul.mubr.bf16.gmra.mrb[0].mxu0 %v556
        %v1054 = vpop.f32.mrb[0].mxu0
        %v1055 = vadd.f32 %v958, %v1054
        %v1056 = vpop.f32.mrb[0].mxu0
        %v1057 = vpop.f32.mrb[0].mxu0
        %v1058 = vadd.f32 %v961, %v1057
        %v1059 = vpop.f32.mrb[0].mxu0
        %1060 = vmatprep.mubr.bf16.mxu0 %v562
        %1061 = vmatmul.mubr.bf16.gmra.mrb[0].mxu0 %v561
        %v1062 = vpop.f32.mrb[0].mxu0
        %v1063 = vadd.f32 %v966, %v1062
        %v1064 = vpop.f32.mrb[0].mxu0
        %v1065 = vpop.f32.mrb[0].mxu0
        %v1066 = vadd.f32 %v969, %v1065
        %v1067 = vpop.f32.mrb[0].mxu0
        %1068 = vmatprep.mubr.bf16.mxu0 %v567
        %1069 = vmatmul.mubr.bf16.gmra.mrb[0].mxu0 %v566
        %v1070 = vpop.f32.mrb[0].mxu0
        %v1071 = vadd.f32 %v974, %v1070
        %v1072 = vpop.f32.mrb[0].mxu0
        %v1073 = vpop.f32.mrb[0].mxu0
        %v1074 = vadd.f32 %v977, %v1073
        %v1075 = vpop.f32.mrb[0].mxu0
        %1076 = vmatprep.mubr.bf16.mxu0 %v572
        %1077 = vmatmul.mubr.bf16.gmra.mrb[0].mxu0 %v571
        %v1078 = vpop.f32.mrb[0].mxu0
        %v1079 = vadd.f32 %v982, %v1078
        %v1080 = vpop.f32.mrb[0].mxu0
        %v1081 = vpop.f32.mrb[0].mxu0
        %v1082 = vadd.f32 %v985, %v1081
        %v1083 = vpop.f32.mrb[0].mxu0
        %1084 = vmatprep.mubr.bf16.mxu0 %v577
        %1085 = vmatmul.mubr.bf16.gmra.mrb[0].mxu0 %v576
        %v1086 = vpop.f32.mrb[0].mxu0
        %v1087 = vadd.f32 %v990, %v1086
        %v1088 = vpop.f32.mrb[0].mxu0
        %v1089 = vpop.f32.mrb[0].mxu0
        %v1090 = vadd.f32 %v993, %v1089
        %v1091 = vpop.f32.mrb[0].mxu0
        %1092 = vdwg.mxu0
        %1093 = vmatprep.subr.bf16.mxu0 0
        %1094 = vmatpush1.bf16.msra.mxu0 %v851
        %1095 = vmatprep.subr.bf16.mxu0 0
        %1096 = vmatpush1.bf16.msra.mxu0 %v852
        %1097 = vmatprep.subr.bf16.mxu0 0
        %1098 = vmatpush1.bf16.msra.mxu0 %v853
        %1099 = vmatprep.subr.bf16.mxu0 0
        %1100 = vmatpush1.bf16.msra.mxu0 %v854
        %1101 = vmatprep.subr.bf16.mxu0 0
        %1102 = vmatpush1.bf16.msra.mxu0 %v855
        %1103 = vmatprep.subr.bf16.mxu0 0
        %1104 = vmatpush1.bf16.msra.mxu0 %v856
        %1105 = vmatprep.subr.bf16.mxu0 0
        %1106 = vmatpush1.bf16.msra.mxu0 %v857
        %1107 = vmatprep.subr.bf16.mxu0 0
        %1108 = vmatpush1.bf16.msra.mxu0 %v858
        %1109 = vmatprep.subr.bf16.mxu0 0
        %1110 = vmatpush1.bf16.msra.mxu0 0
        %1111 = vmatprep.subr.bf16.mxu0 0
        %1112 = vmatpush1.bf16.msra.mxu0 0
        %1113 = vmatprep.subr.bf16.mxu0 0
        %1114 = vmatpush1.bf16.msra.mxu0 0
        %1115 = vmatprep.subr.bf16.mxu0 0
        %1116 = vmatpush1.bf16.msra.mxu0 0
        %1117 = vmatprep.subr.bf16.mxu0 0
        %1118 = vmatpush1.bf16.msra.mxu0 0
        %1119 = vmatprep.subr.bf16.mxu0 0
        %1120 = vmatpush1.bf16.msra.mxu0 0
        %1121 = vmatprep.subr.bf16.mxu0 0
        %1122 = vmatpush1.bf16.msra.mxu0 0
        %1123 = vmatprep.subr.bf16.mxu0 0
        %1124 = vmatpush1.bf16.msra.mxu0 0
        %1125 = vmatprep.mubr.bf16.mxu0 0
        %1126 = vmatmul.mubr.bf16.gmra.mrb[0].mxu0 %v543
        %v1127 = vpop.f32.mrb[0].mxu0
        %v1128 = vadd.f32 %v1031, %v1127
        %v1129 = vpop.f32.mrb[0].mxu0
        %v1130 = vpop.f32.mrb[0].mxu0
        %v1131 = vadd.f32 %v1034, %v1130
        %v1132 = vpop.f32.mrb[0].mxu0
        %1133 = vmatprep.mubr.bf16.mxu0 0
        %1134 = vmatmul.mubr.bf16.gmra.mrb[0].mxu0 %v548
        %v1135 = vpop.f32.mrb[0].mxu0
        %v1136 = vadd.f32 %v1039, %v1135
        %v1137 = vpop.f32.mrb[0].mxu0
        %v1138 = vpop.f32.mrb[0].mxu0
        %v1139 = vadd.f32 %v1042, %v1138
        %v1140 = vpop.f32.mrb[0].mxu0
        %1141 = vmatprep.mubr.bf16.mxu0 0
        %1142 = vmatmul.mubr.bf16.gmra.mrb[0].mxu0 %v553
        %v1143 = vpop.f32.mrb[0].mxu0
        %v1144 = vadd.f32 %v1047, %v1143
        %v1145 = vpop.f32.mrb[0].mxu0
        %v1146 = vpop.f32.mrb[0].mxu0
        %v1147 = vadd.f32 %v1050, %v1146
        %v1148 = vpop.f32.mrb[0].mxu0
        %1149 = vmatprep.mubr.bf16.mxu0 0
        %1150 = vmatmul.mubr.bf16.gmra.mrb[0].mxu0 %v558
        %v1151 = vpop.f32.mrb[0].mxu0
        %v1152 = vadd.f32 %v1055, %v1151
        %v1153 = vpop.f32.mrb[0].mxu0
        %v1154 = vpop.f32.mrb[0].mxu0
        %v1155 = vadd.f32 %v1058, %v1154
        %v1156 = vpop.f32.mrb[0].mxu0
        %1157 = vmatprep.mubr.bf16.mxu0 0
        %1158 = vmatmul.mubr.bf16.gmra.mrb[0].mxu0 %v563
        %v1159 = vpop.f32.mrb[0].mxu0
        %v1160 = vadd.f32 %v1063, %v1159
        %v1161 = vpop.f32.mrb[0].mxu0
        %v1162 = vpop.f32.mrb[0].mxu0
        %v1163 = vadd.f32 %v1066, %v1162
        %v1164 = vpop.f32.mrb[0].mxu0
        %1165 = vmatprep.mubr.bf16.mxu0 0
        %1166 = vmatmul.mubr.bf16.gmra.mrb[0].mxu0 %v568
        %v1167 = vpop.f32.mrb[0].mxu0
        %v1168 = vadd.f32 %v1071, %v1167
        %v1169 = vpop.f32.mrb[0].mxu0
        %v1170 = vpop.f32.mrb[0].mxu0
        %v1171 = vadd.f32 %v1074, %v1170
        %v1172 = vpop.f32.mrb[0].mxu0
        %1173 = vmatprep.mubr.bf16.mxu0 0
        %1174 = vmatmul.mubr.bf16.gmra.mrb[0].mxu0 %v573
        %v1175 = vpop.f32.mrb[0].mxu0
        %v1176 = vadd.f32 %v1079, %v1175
        %v1177 = vpop.f32.mrb[0].mxu0
        %v1178 = vpop.f32.mrb[0].mxu0
        %v1179 = vadd.f32 %v1082, %v1178
        %v1180 = vpop.f32.mrb[0].mxu0
        %1181 = vmatprep.mubr.bf16.mxu0 0
        %1182 = vmatmul.mubr.bf16.gmra.mrb[0].mxu0 %v578
        %v1183 = vpop.f32.mrb[0].mxu0
        %v1184 = vadd.f32 %v1087, %v1183
        %v1185 = vpop.f32.mrb[0].mxu0
        %v1186 = vpop.f32.mrb[0].mxu0
        %v1187 = vadd.f32 %v1090, %v1186
        %v1188 = vpop.f32.mrb[0].mxu0
        %1189 = vdwg.mxu0
        %v1190 = vld [vmem:[%s4] sm:$0x1]
        %v1192 = vlaneseq
        %v1193 = vshrl.u32 %v1192, 7
        %v1194 = vsub.s32 0, %v1193
        %v1195 = vrot.slane %v1190, %v1194
        %v1197 = vmul.f32 %v1128, %v1195
        %v1198 = vmul.f32 %v1131, %v1195
        %v1199 = vmul.f32 %v1136, %v1195
        %v1200 = vmul.f32 %v1139, %v1195
        %v1201 = vmul.f32 %v1144, %v1195
        %v1202 = vmul.f32 %v1147, %v1195
        %v1203 = vmul.f32 %v1152, %v1195
        %v1204 = vmul.f32 %v1155, %v1195
        %v1205 = vmul.f32 %v1160, %v1195
        %v1206 = vmul.f32 %v1163, %v1195
        %v1207 = vmul.f32 %v1168, %v1195
        %v1208 = vmul.f32 %v1171, %v1195
        %v1209 = vmul.f32 %v1176, %v1195
        %v1210 = vmul.f32 %v1179, %v1195
        %v1211 = vmul.f32 %v1184, %v1195
        %v1212 = vmul.f32 %v1187, %v1195
        %v1213 = vld [vmem:[%s5] sm:$0x1]
        %v1215 = vlaneseq
        %v1216 = vshrl.u32 %v1215, 7
        %v1217 = vsub.s32 0, %v1216
        %v1218 = vrot.slane %v1213, %v1217
        %v1220 = vadd.f32 %v1197, %v1218
        %v1221 = vadd.f32 %v1198, %v1218
        %v1222 = vadd.f32 %v1199, %v1218
        %v1223 = vadd.f32 %v1200, %v1218
        %v1224 = vadd.f32 %v1201, %v1218
        %v1225 = vadd.f32 %v1202, %v1218
        %v1226 = vadd.f32 %v1203, %v1218
        %v1227 = vadd.f32 %v1204, %v1218
        %v1228 = vadd.f32 %v1205, %v1218
        %v1229 = vadd.f32 %v1206, %v1218
        %v1230 = vadd.f32 %v1207, %v1218
        %v1231 = vadd.f32 %v1208, %v1218
        %v1232 = vadd.f32 %v1209, %v1218
        %v1233 = vadd.f32 %v1210, %v1218
        %v1234 = vadd.f32 %v1211, %v1218
        %v1235 = vadd.f32 %v1212, %v1218
        %v1236 = vmax.f32 %v1220, 0.0
        %v1237 = vmax.f32 %v1221, 0.0
        %v1238 = vmax.f32 %v1222, 0.0
        %v1239 = vmax.f32 %v1223, 0.0
        %v1240 = vmax.f32 %v1224, 0.0
        %v1241 = vmax.f32 %v1225, 0.0
        %v1242 = vmax.f32 %v1226, 0.0
        %v1243 = vmax.f32 %v1227, 0.0
        %v1244 = vmax.f32 %v1228, 0.0
        %v1245 = vmax.f32 %v1229, 0.0
        %v1246 = vmax.f32 %v1230, 0.0
        %v1247 = vmax.f32 %v1231, 0.0
        %v1248 = vmax.f32 %v1232, 0.0
        %v1249 = vmax.f32 %v1233, 0.0
        %v1250 = vmax.f32 %v1234, 0.0
        %v1251 = vmax.f32 %v1235, 0.0
        %v1252 = vrot.slane %v1236, 6
        %v1253 = vrot.slane %v1237, 6
        %v1254 = vrot.slane %v1238, 6
        %v1255 = vrot.slane %v1239, 6
        %v1256 = vrot.slane %v1240, 6
        %v1257 = vrot.slane %v1241, 6
        %v1258 = vrot.slane %v1242, 6
        %v1259 = vrot.slane %v1243, 6
        %v1260 = vrot.slane %v1244, 6
        %v1261 = vrot.slane %v1245, 6
        %v1262 = vrot.slane %v1246, 6
        %v1263 = vrot.slane %v1247, 6
        %v1264 = vrot.slane %v1248, 6
        %v1265 = vrot.slane %v1249, 6
        %v1266 = vrot.slane %v1250, 6
        %v1267 = vrot.slane %v1251, 6
        %v1268 = vsel %vm423, %v1266, %v1267
        %v1269 = vsel %vm423, %v1265, %v1266
        %v1270 = vsel %vm423, %v1264, %v1265
        %v1271 = vsel %vm423, %v1263, %v1264
        %v1272 = vsel %vm423, %v1262, %v1263
        %v1273 = vsel %vm423, %v1261, %v1262
        %v1274 = vsel %vm423, %v1260, %v1261
        %v1275 = vsel %vm423, %v1259, %v1260
        %v1276 = vsel %vm423, %v1258, %v1259
        %v1277 = vsel %vm423, %v1257, %v1258
        %v1278 = vsel %vm423, %v1256, %v1257
        %v1279 = vsel %vm423, %v1255, %v1256
        %v1280 = vsel %vm423, %v1254, %v1255
        %v1281 = vsel %vm423, %v1253, %v1254
        %v1282 = vsel %vm423, %v1252, %v1253
        %v1283 = vsel %vm423, %v1267, %v1252
        %v1284 = vrot.slane %v1236, 7
        %v1285 = vrot.slane %v1237, 7
        %v1286 = vrot.slane %v1238, 7
        %v1287 = vrot.slane %v1239, 7
        %v1288 = vrot.slane %v1240, 7
        %v1289 = vrot.slane %v1241, 7
        %v1290 = vrot.slane %v1242, 7
        %v1291 = vrot.slane %v1243, 7
        %v1292 = vrot.slane %v1244, 7
        %v1293 = vrot.slane %v1245, 7
        %v1294 = vrot.slane %v1246, 7
        %v1295 = vrot.slane %v1247, 7
        %v1296 = vrot.slane %v1248, 7
        %v1297 = vrot.slane %v1249, 7
        %v1298 = vrot.slane %v1250, 7
        %v1299 = vrot.slane %v1251, 7
        %v1300 = vsel %vm456, %v1298, %v1299
        %v1301 = vsel %vm456, %v1297, %v1298
        %v1302 = vsel %vm456, %v1296, %v1297
        %v1303 = vsel %vm456, %v1295, %v1296
        %v1304 = vsel %vm456, %v1294, %v1295
        %v1305 = vsel %vm456, %v1293, %v1294
        %v1306 = vsel %vm456, %v1292, %v1293
        %v1307 = vsel %vm456, %v1291, %v1292
        %v1308 = vsel %vm456, %v1290, %v1291
        %v1309 = vsel %vm456, %v1289, %v1290
        %v1310 = vsel %vm456, %v1288, %v1289
        %v1311 = vsel %vm456, %v1287, %v1288
        %v1312 = vsel %vm456, %v1286, %v1287
        %v1313 = vsel %vm456, %v1285, %v1286
        %v1314 = vsel %vm456, %v1284, %v1285
        %v1315 = vsel %vm456, %v1299, %v1284
        %v1316 = vrot.slane %v1236, 1
        %v1317 = vrot.slane %v1237, 1
        %v1318 = vrot.slane %v1238, 1
        %v1319 = vrot.slane %v1239, 1
        %v1320 = vrot.slane %v1240, 1
        %v1321 = vrot.slane %v1241, 1
        %v1322 = vrot.slane %v1242, 1
        %v1323 = vrot.slane %v1243, 1
        %v1324 = vrot.slane %v1244, 1
        %v1325 = vrot.slane %v1245, 1
        %v1326 = vrot.slane %v1246, 1
        %v1327 = vrot.slane %v1247, 1
        %v1328 = vrot.slane %v1248, 1
        %v1329 = vrot.slane %v1249, 1
        %v1330 = vrot.slane %v1250, 1
        %v1331 = vrot.slane %v1251, 1
        %v1332 = vsel %vm489, %v1330, %v1331
        %v1333 = vsel %vm489, %v1329, %v1330
        %v1334 = vsel %vm489, %v1328, %v1329
        %v1335 = vsel %vm489, %v1327, %v1328
        %v1336 = vsel %vm489, %v1326, %v1327
        %v1337 = vsel %vm489, %v1325, %v1326
        %v1338 = vsel %vm489, %v1324, %v1325
        %v1339 = vsel %vm489, %v1323, %v1324
        %v1340 = vsel %vm489, %v1322, %v1323
        %v1341 = vsel %vm489, %v1321, %v1322
        %v1342 = vsel %vm489, %v1320, %v1321
        %v1343 = vsel %vm489, %v1319, %v1320
        %v1344 = vsel %vm489, %v1318, %v1319
        %v1345 = vsel %vm489, %v1317, %v1318
        %v1346 = vsel %vm489, %v1316, %v1317
        %v1347 = vsel %vm489, %v1331, %v1316
        %v1348 = vrot.slane %v1236, 2
        %v1349 = vrot.slane %v1237, 2
        %v1350 = vrot.slane %v1238, 2
        %v1351 = vrot.slane %v1239, 2
        %v1352 = vrot.slane %v1240, 2
        %v1353 = vrot.slane %v1241, 2
        %v1354 = vrot.slane %v1242, 2
        %v1355 = vrot.slane %v1243, 2
        %v1356 = vrot.slane %v1244, 2
        %v1357 = vrot.slane %v1245, 2
        %v1358 = vrot.slane %v1246, 2
        %v1359 = vrot.slane %v1247, 2
        %v1360 = vrot.slane %v1248, 2
        %v1361 = vrot.slane %v1249, 2
        %v1362 = vrot.slane %v1250, 2
        %v1363 = vrot.slane %v1251, 2
        %v1364 = vsel %vm522, %v1362, %v1363
        %v1365 = vsel %vm522, %v1361, %v1362
        %v1366 = vsel %vm522, %v1360, %v1361
        %v1367 = vsel %vm522, %v1359, %v1360
        %v1368 = vsel %vm522, %v1358, %v1359
        %v1369 = vsel %vm522, %v1357, %v1358
        %v1370 = vsel %vm522, %v1356, %v1357
        %v1371 = vsel %vm522, %v1355, %v1356
        %v1372 = vsel %vm522, %v1354, %v1355
        %v1373 = vsel %vm522, %v1353, %v1354
        %v1374 = vsel %vm522, %v1352, %v1353
        %v1375 = vsel %vm522, %v1351, %v1352
        %v1376 = vsel %vm522, %v1350, %v1351
        %v1377 = vsel %vm522, %v1349, %v1350
        %v1378 = vsel %vm522, %v1348, %v1349
        %v1379 = vsel %vm522, %v1363, %v1348
        %v1380 = vpack.c.bf16 %v1282, %v1283
        %v1381 = vpack.c.bf16 %v1314, %v1315
        %v1382 = vpack.c.bf16 %v1237, %v1236
        %v1383 = vpack.c.bf16 %v1345, %v1346
        %v1384 = vpack.c.bf16 %v1377, %v1378
        %v1385 = vpack.c.bf16 %v1280, %v1281
        %v1386 = vpack.c.bf16 %v1312, %v1313
        %v1387 = vpack.c.bf16 %v1239, %v1238
        %v1388 = vpack.c.bf16 %v1343, %v1344
        %v1389 = vpack.c.bf16 %v1375, %v1376
        %v1390 = vpack.c.bf16 %v1278, %v1279
        %v1391 = vpack.c.bf16 %v1310, %v1311
        %v1392 = vpack.c.bf16 %v1241, %v1240
        %v1393 = vpack.c.bf16 %v1341, %v1342
        %v1394 = vpack.c.bf16 %v1373, %v1374
        %v1395 = vpack.c.bf16 %v1276, %v1277
        %v1396 = vpack.c.bf16 %v1308, %v1309
        %v1397 = vpack.c.bf16 %v1243, %v1242
        %v1398 = vpack.c.bf16 %v1339, %v1340
        %v1399 = vpack.c.bf16 %v1371, %v1372
        %v1400 = vpack.c.bf16 %v1274, %v1275
        %v1401 = vpack.c.bf16 %v1306, %v1307
        %v1402 = vpack.c.bf16 %v1245, %v1244
        %v1403 = vpack.c.bf16 %v1337, %v1338
        %v1404 = vpack.c.bf16 %v1369, %v1370
        %v1405 = vpack.c.bf16 %v1272, %v1273
        %v1406 = vpack.c.bf16 %v1304, %v1305
        %v1407 = vpack.c.bf16 %v1247, %v1246
        %v1408 = vpack.c.bf16 %v1335, %v1336
        %v1409 = vpack.c.bf16 %v1367, %v1368
        %v1410 = vpack.c.bf16 %v1270, %v1271
        %v1411 = vpack.c.bf16 %v1302, %v1303
        %v1412 = vpack.c.bf16 %v1249, %v1248
        %v1413 = vpack.c.bf16 %v1333, %v1334
        %v1414 = vpack.c.bf16 %v1365, %v1366
        %v1415 = vpack.c.bf16 %v1268, %v1269
        %v1416 = vpack.c.bf16 %v1300, %v1301
        %v1417 = vpack.c.bf16 %v1251, %v1250
        %v1418 = vpack.c.bf16 %v1347, %v1332
        %v1419 = vpack.c.bf16 %v1379, %v1364
        %v1420 = vld [vmem:[#allocation7] sm:$0xf]
        %v1421 = vld [vmem:[#allocation7 + $0x4] sm:$0xf]
        %v1422 = vld [vmem:[#allocation7 + $0x8] sm:$0xf]
        %v1423 = vld [vmem:[#allocation7 + $0xc] sm:$0xf]
        %v1424 = vld [vmem:[#allocation7 + $0x10] sm:$0xf]
        %v1425 = vld [vmem:[#allocation7 + $0x14] sm:$0xf]
        %v1426 = vld [vmem:[#allocation7 + $0x18] sm:$0xf]
        %v1427 = vld [vmem:[#allocation7 + $0x1c] sm:$0xf]
        %v1428 = vld [vmem:[#allocation7 + $0x20] sm:$0xf]
        %v1429 = vld [vmem:[#allocation7 + $0x24] sm:$0xf]
        %v1430 = vld [vmem:[#allocation7 + $0x28] sm:$0xf]
        %v1431 = vld [vmem:[#allocation7 + $0x2c] sm:$0xf]
        %v1432 = vld [vmem:[#allocation7 + $0x30] sm:$0xf]
        %v1433 = vld [vmem:[#allocation7 + $0x34] sm:$0xf]
        %v1434 = vld [vmem:[#allocation7 + $0x38] sm:$0xf]
        %v1435 = vld [vmem:[#allocation7 + $0x3c] sm:$0xf]
        %v1436 = vld [vmem:[#allocation7 + $0x40] sm:$0xf]
        %v1437 = vld [vmem:[#allocation7 + $0x44] sm:$0xf]
        %v1438 = vld [vmem:[#allocation7 + $0x48] sm:$0xf]
        %v1439 = vld [vmem:[#allocation7 + $0x4c] sm:$0xf]
        %v1440 = vld [vmem:[#allocation7 + $0x50] sm:$0xf]
        %v1441 = vld [vmem:[#allocation7 + $0x54] sm:$0xf]
        %v1442 = vld [vmem:[#allocation7 + $0x58] sm:$0xf]
        %v1443 = vld [vmem:[#allocation7 + $0x5c] sm:$0xf]
        %v1444 = vld [vmem:[#allocation7 + $0x60] sm:$0xf]
        %v1445 = vld [vmem:[#allocation7 + $0x64] sm:$0xf]
        %v1446 = vld [vmem:[#allocation7 + $0x68] sm:$0xf]
        %v1447 = vld [vmem:[#allocation7 + $0x6c] sm:$0xf]
        %v1448 = vld [vmem:[#allocation7 + $0x70] sm:$0xf]
        %v1449 = vld [vmem:[#allocation7 + $0x74] sm:$0xf]
        %v1450 = vld [vmem:[#allocation7 + $0x78] sm:$0xf]
        %v1451 = vld [vmem:[#allocation7 + $0x7c] sm:$0xf]
        %v1452 = vld [vmem:[#allocation7 + $0x80] sm:$0xf]
        %v1453 = vld [vmem:[#allocation7 + $0x84] sm:$0xf]
        %v1454 = vld [vmem:[#allocation7 + $0x88] sm:$0xf]
        %v1455 = vld [vmem:[#allocation7 + $0x8c] sm:$0xf]
        %v1456 = vld [vmem:[#allocation7 + $0x90] sm:$0xf]
        %v1457 = vld [vmem:[#allocation7 + $0x94] sm:$0xf]
        %v1458 = vld [vmem:[#allocation7 + $0x98] sm:$0xf]
        %v1459 = vld [vmem:[#allocation7 + $0x9c] sm:$0xf]
        %v1460 = vld [vmem:[#allocation7 + $0xa0] sm:$0xf]
        %v1461 = vld [vmem:[#allocation7 + $0xa4] sm:$0xf]
        %v1462 = vld [vmem:[#allocation7 + $0xa8] sm:$0xf]
        %v1463 = vld [vmem:[#allocation7 + $0xac] sm:$0xf]
        %v1464 = vld [vmem:[#allocation7 + $0xb0] sm:$0xf]
        %v1465 = vld [vmem:[#allocation7 + $0xb4] sm:$0xf]
        %v1466 = vld [vmem:[#allocation7 + $0xb8] sm:$0xf]
        %v1467 = vld [vmem:[#allocation7 + $0xbc] sm:$0xf]
        %v1468 = vld [vmem:[#allocation7 + $0xc0] sm:$0xf]
        %v1469 = vld [vmem:[#allocation7 + $0xc4] sm:$0xf]
        %v1470 = vld [vmem:[#allocation7 + $0xc8] sm:$0xf]
        %v1471 = vld [vmem:[#allocation7 + $0xcc] sm:$0xf]
        %v1472 = vld [vmem:[#allocation7 + $0xd0] sm:$0xf]
        %v1473 = vld [vmem:[#allocation7 + $0xd4] sm:$0xf]
        %v1474 = vld [vmem:[#allocation7 + $0xd8] sm:$0xf]
        %v1475 = vld [vmem:[#allocation7 + $0xdc] sm:$0xf]
        %v1476 = vld [vmem:[#allocation7 + $0xe0] sm:$0xf]
        %v1477 = vld [vmem:[#allocation7 + $0xe4] sm:$0xf]
        %v1478 = vld [vmem:[#allocation7 + $0xe8] sm:$0xf]
        %v1479 = vld [vmem:[#allocation7 + $0xec] sm:$0xf]
        %v1480 = vld [vmem:[#allocation7 + $0xf0] sm:$0xf]
        %v1481 = vld [vmem:[#allocation7 + $0xf4] sm:$0xf]
        %v1482 = vld [vmem:[#allocation7 + $0xf8] sm:$0xf]
        %v1483 = vld [vmem:[#allocation7 + $0xfc] sm:$0xf]
        %v1484 = vld [vmem:[#allocation7 + $0x100] sm:$0xf]
        %v1485 = vld [vmem:[#allocation7 + $0x104] sm:$0xf]
        %v1486 = vld [vmem:[#allocation7 + $0x108] sm:$0xf]
        %v1487 = vld [vmem:[#allocation7 + $0x10c] sm:$0xf]
        %v1488 = vld [vmem:[#allocation7 + $0x110] sm:$0xf]
        %v1489 = vld [vmem:[#allocation7 + $0x114] sm:$0xf]
        %v1490 = vld [vmem:[#allocation7 + $0x118] sm:$0xf]
        %v1491 = vld [vmem:[#allocation7 + $0x11c] sm:$0xf]
        %v1492 = vld [vmem:[#allocation7 + $0x120] sm:$0xf]
        %v1493 = vld [vmem:[#allocation7 + $0x124] sm:$0xf]
        %v1494 = vld [vmem:[#allocation7 + $0x128] sm:$0xf]
        %v1495 = vld [vmem:[#allocation7 + $0x12c] sm:$0xf]
        %v1496 = vld [vmem:[#allocation7 + $0x130] sm:$0xf]
        %v1497 = vld [vmem:[#allocation7 + $0x134] sm:$0xf]
        %v1498 = vld [vmem:[#allocation7 + $0x138] sm:$0xf]
        %v1499 = vld [vmem:[#allocation7 + $0x13c] sm:$0xf]
        %v1580 = vunpack.c.l.b16 %v1420
        %v1581 = vunpack.c.l.b16 %v1421
        %v1582 = vunpack.c.l.b16 %v1422
        %v1583 = vunpack.c.l.b16 %v1423
        %v1584 = vunpack.c.l.b16 %v1424
        %v1585 = vunpack.c.l.b16 %v1425
        %v1586 = vunpack.c.l.b16 %v1426
        %v1587 = vunpack.c.l.b16 %v1427
        %v1588 = vunpack.c.l.b16 %v1428
        %v1589 = vunpack.c.l.b16 %v1429
        %v1590 = vunpack.c.l.b16 %v1430
        %v1591 = vunpack.c.l.b16 %v1431
        %v1592 = vunpack.c.l.b16 %v1432
        %v1593 = vunpack.c.l.b16 %v1433
        %v1594 = vunpack.c.l.b16 %v1434
        %v1595 = vunpack.c.l.b16 %v1435
        %v1596 = vunpack.c.l.b16 %v1436
        %v1597 = vunpack.c.l.b16 %v1437
        %v1598 = vunpack.c.l.b16 %v1438
        %v1599 = vunpack.c.l.b16 %v1439
        %v1600 = vunpack.c.l.b16 %v1440
        %v1601 = vunpack.c.l.b16 %v1441
        %v1602 = vunpack.c.l.b16 %v1442
        %v1603 = vunpack.c.l.b16 %v1443
        %v1604 = vunpack.c.l.b16 %v1444
        %v1605 = vunpack.c.l.b16 %v1445
        %v1606 = vunpack.c.l.b16 %v1446
        %v1607 = vunpack.c.l.b16 %v1447
        %v1608 = vunpack.c.l.b16 %v1448
        %v1609 = vunpack.c.l.b16 %v1449
        %v1610 = vunpack.c.l.b16 %v1450
        %v1611 = vunpack.c.l.b16 %v1451
        %v1612 = vunpack.c.l.b16 %v1452
        %v1613 = vunpack.c.l.b16 %v1453
        %v1614 = vunpack.c.l.b16 %v1454
        %v1615 = vunpack.c.l.b16 %v1455
        %v1616 = vunpack.c.l.b16 %v1456
        %v1617 = vunpack.c.l.b16 %v1457
        %v1618 = vunpack.c.l.b16 %v1458
        %v1619 = vunpack.c.l.b16 %v1459
        %v1620 = vunpack.c.l.b16 %v1460
        %v1621 = vunpack.c.l.b16 %v1461
        %v1622 = vunpack.c.l.b16 %v1462
        %v1623 = vunpack.c.l.b16 %v1463
        %v1624 = vunpack.c.l.b16 %v1464
        %v1625 = vunpack.c.l.b16 %v1465
        %v1626 = vunpack.c.l.b16 %v1466
        %v1627 = vunpack.c.l.b16 %v1467
        %v1628 = vunpack.c.l.b16 %v1468
        %v1629 = vunpack.c.l.b16 %v1469
        %v1630 = vunpack.c.l.b16 %v1470
        %v1631 = vunpack.c.l.b16 %v1471
        %v1632 = vunpack.c.l.b16 %v1472
        %v1633 = vunpack.c.l.b16 %v1473
        %v1634 = vunpack.c.l.b16 %v1474
        %v1635 = vunpack.c.l.b16 %v1475
        %v1636 = vunpack.c.l.b16 %v1476
        %v1637 = vunpack.c.l.b16 %v1477
        %v1638 = vunpack.c.l.b16 %v1478
        %v1639 = vunpack.c.l.b16 %v1479
        %v1640 = vunpack.c.l.b16 %v1480
        %v1641 = vunpack.c.l.b16 %v1481
        %v1642 = vunpack.c.l.b16 %v1482
        %v1643 = vunpack.c.l.b16 %v1483
        %v1644 = vunpack.c.l.b16 %v1484
        %v1645 = vunpack.c.l.b16 %v1485
        %v1646 = vunpack.c.l.b16 %v1486
        %v1647 = vunpack.c.l.b16 %v1487
        %v1648 = vunpack.c.l.b16 %v1488
        %v1649 = vunpack.c.l.b16 %v1489
        %v1650 = vunpack.c.l.b16 %v1490
        %v1651 = vunpack.c.l.b16 %v1491
        %v1652 = vunpack.c.l.b16 %v1492
        %v1653 = vunpack.c.l.b16 %v1493
        %v1654 = vunpack.c.l.b16 %v1494
        %v1655 = vunpack.c.l.b16 %v1495
        %v1656 = vunpack.c.l.b16 %v1496
        %v1657 = vunpack.c.l.b16 %v1497
        %v1658 = vunpack.c.l.b16 %v1498
        %v1659 = vunpack.c.l.b16 %v1499
        %v1660 = vpack.c.b16 %v1581, %v1580
        %v1661 = vpack.c.b16 %v1583, %v1582
        %v1662 = vpack.c.b16 %v1585, %v1584
        %v1663 = vpack.c.b16 %v1587, %v1586
        %v1664 = vpack.c.b16 %v1589, %v1588
        %v1665 = vpack.c.b16 %v1591, %v1590
        %v1666 = vpack.c.b16 %v1593, %v1592
        %v1667 = vpack.c.b16 %v1595, %v1594
        %v1668 = vpack.c.b16 %v1597, %v1596
        %v1669 = vpack.c.b16 %v1599, %v1598
        %v1670 = vpack.c.b16 %v1601, %v1600
        %v1671 = vpack.c.b16 %v1603, %v1602
        %v1672 = vpack.c.b16 %v1605, %v1604
        %v1673 = vpack.c.b16 %v1607, %v1606
        %v1674 = vpack.c.b16 %v1609, %v1608
        %v1675 = vpack.c.b16 %v1611, %v1610
        %v1676 = vpack.c.b16 %v1613, %v1612
        %v1677 = vpack.c.b16 %v1615, %v1614
        %v1678 = vpack.c.b16 %v1617, %v1616
        %v1679 = vpack.c.b16 %v1619, %v1618
        %v1680 = vpack.c.b16 %v1621, %v1620
        %v1681 = vpack.c.b16 %v1623, %v1622
        %v1682 = vpack.c.b16 %v1625, %v1624
        %v1683 = vpack.c.b16 %v1627, %v1626
        %v1684 = vpack.c.b16 %v1629, %v1628
        %v1685 = vpack.c.b16 %v1631, %v1630
        %v1686 = vpack.c.b16 %v1633, %v1632
        %v1687 = vpack.c.b16 %v1635, %v1634
        %v1688 = vpack.c.b16 %v1637, %v1636
        %v1689 = vpack.c.b16 %v1639, %v1638
        %v1690 = vpack.c.b16 %v1641, %v1640
        %v1691 = vpack.c.b16 %v1643, %v1642
        %v1692 = vpack.c.b16 %v1645, %v1644
        %v1693 = vpack.c.b16 %v1647, %v1646
        %v1694 = vpack.c.b16 %v1649, %v1648
        %v1695 = vpack.c.b16 %v1651, %v1650
        %v1696 = vpack.c.b16 %v1653, %v1652
        %v1697 = vpack.c.b16 %v1655, %v1654
        %v1698 = vpack.c.b16 %v1657, %v1656
        %v1699 = vpack.c.b16 %v1659, %v1658
        %1740 = vmatprep.subr.bf16.mxu0 0
        %1741 = vmatpush1.bf16.msra.mxu0 %v1660
        %1742 = vmatprep.subr.bf16.mxu0 0
        %1743 = vmatpush1.bf16.msra.mxu0 %v1661
        %1744 = vmatprep.subr.bf16.mxu0 0
        %1745 = vmatpush1.bf16.msra.mxu0 %v1662
        %1746 = vmatprep.subr.bf16.mxu0 0
        %1747 = vmatpush1.bf16.msra.mxu0 %v1663
        %1748 = vmatprep.subr.bf16.mxu0 0
        %1749 = vmatpush1.bf16.msra.mxu0 %v1664
        %1750 = vmatprep.subr.bf16.mxu0 0
        %1751 = vmatpush1.bf16.msra.mxu0 %v1665
        %1752 = vmatprep.subr.bf16.mxu0 0
        %1753 = vmatpush1.bf16.msra.mxu0 %v1666
        %1754 = vmatprep.subr.bf16.mxu0 0
        %1755 = vmatpush1.bf16.msra.mxu0 %v1667
        %1756 = vmatprep.subr.bf16.mxu0 0
        %1757 = vmatpush1.bf16.msra.mxu0 %v1668
        %1758 = vmatprep.subr.bf16.mxu0 0
        %1759 = vmatpush1.bf16.msra.mxu0 %v1669
        %1760 = vmatprep.subr.bf16.mxu0 0
        %1761 = vmatpush1.bf16.msra.mxu0 %v1670
        %1762 = vmatprep.subr.bf16.mxu0 0
        %1763 = vmatpush1.bf16.msra.mxu0 %v1671
        %1764 = vmatprep.subr.bf16.mxu0 0
        %1765 = vmatpush1.bf16.msra.mxu0 %v1672
        %1766 = vmatprep.subr.bf16.mxu0 0
        %1767 = vmatpush1.bf16.msra.mxu0 %v1673
        %1768 = vmatprep.subr.bf16.mxu0 0
        %1769 = vmatpush1.bf16.msra.mxu0 %v1674
        %1770 = vmatprep.subr.bf16.mxu0 0
        %1771 = vmatpush1.bf16.msra.mxu0 %v1675
        %1772 = vmatprep.mubr.bf16.mxu0 %v1381
        %1773 = vmatmul.mubr.bf16.gmra.mrb[0].mxu0 %v1380
        %v1774 = vpop.f32.mrb[0].mxu0
        %v1775 = vadd.f32 %v327, %v1774
        %v1776 = vpop.f32.mrb[0].mxu0
        %v1777 = vpop.f32.mrb[0].mxu0
        %v1778 = vadd.f32 %v328, %v1777
        %v1779 = vpop.f32.mrb[0].mxu0
        %1780 = vmatprep.mubr.bf16.mxu0 %v1386
        %1781 = vmatmul.mubr.bf16.gmra.mrb[0].mxu0 %v1385
        %v1782 = vpop.f32.mrb[0].mxu0
        %v1783 = vadd.f32 %v329, %v1782
        %v1784 = vpop.f32.mrb[0].mxu0
        %v1785 = vpop.f32.mrb[0].mxu0
        %v1786 = vadd.f32 %v330, %v1785
        %v1787 = vpop.f32.mrb[0].mxu0
        %1788 = vmatprep.mubr.bf16.mxu0 %v1391
        %1789 = vmatmul.mubr.bf16.gmra.mrb[0].mxu0 %v1390
        %v1790 = vpop.f32.mrb[0].mxu0
        %v1791 = vadd.f32 %v331, %v1790
        %v1792 = vpop.f32.mrb[0].mxu0
        %v1793 = vpop.f32.mrb[0].mxu0
        %v1794 = vadd.f32 %v332, %v1793
        %v1795 = vpop.f32.mrb[0].mxu0
        %1796 = vmatprep.mubr.bf16.mxu0 %v1396
        %1797 = vmatmul.mubr.bf16.gmra.mrb[0].mxu0 %v1395
        %v1798 = vpop.f32.mrb[0].mxu0
        %v1799 = vadd.f32 %v333, %v1798
        %v1800 = vpop.f32.mrb[0].mxu0
        %v1801 = vpop.f32.mrb[0].mxu0
        %v1802 = vadd.f32 %v334, %v1801
        %v1803 = vpop.f32.mrb[0].mxu0
        %1804 = vmatprep.mubr.bf16.mxu0 %v1401
        %1805 = vmatmul.mubr.bf16.gmra.mrb[0].mxu0 %v1400
        %v1806 = vpop.f32.mrb[0].mxu0
        %v1807 = vadd.f32 %v335, %v1806
        %v1808 = vpop.f32.mrb[0].mxu0
        %v1809 = vpop.f32.mrb[0].mxu0
        %v1810 = vadd.f32 %v336, %v1809
        %v1811 = vpop.f32.mrb[0].mxu0
        %1812 = vmatprep.mubr.bf16.mxu0 %v1406
        %1813 = vmatmul.mubr.bf16.gmra.mrb[0].mxu0 %v1405
        %v1814 = vpop.f32.mrb[0].mxu0
        %v1815 = vadd.f32 %v337, %v1814
        %v1816 = vpop.f32.mrb[0].mxu0
        %v1817 = vpop.f32.mrb[0].mxu0
        %v1818 = vadd.f32 %v338, %v1817
        %v1819 = vpop.f32.mrb[0].mxu0
        %1820 = vmatprep.mubr.bf16.mxu0 %v1411
        %1821 = vmatmul.mubr.bf16.gmra.mrb[0].mxu0 %v1410
        %v1822 = vpop.f32.mrb[0].mxu0
        %v1823 = vadd.f32 %v339, %v1822
        %v1824 = vpop.f32.mrb[0].mxu0
        %v1825 = vpop.f32.mrb[0].mxu0
        %v1826 = vadd.f32 %v340, %v1825
        %v1827 = vpop.f32.mrb[0].mxu0
        %1828 = vmatprep.mubr.bf16.mxu0 %v1416
        %1829 = vmatmul.mubr.bf16.gmra.mrb[0].mxu0 %v1415
        %v1830 = vpop.f32.mrb[0].mxu0
        %v1831 = vadd.f32 %v341, %v1830
        %v1832 = vpop.f32.mrb[0].mxu0
        %v1833 = vpop.f32.mrb[0].mxu0
        %v1834 = vadd.f32 %v342, %v1833
        %v1835 = vpop.f32.mrb[0].mxu0
        %1836 = vdwg.mxu0
        %1837 = vmatprep.subr.bf16.mxu0 0
        %1838 = vmatpush1.bf16.msra.mxu0 %v1676
        %1839 = vmatprep.subr.bf16.mxu0 0
        %1840 = vmatpush1.bf16.msra.mxu0 %v1677
        %1841 = vmatprep.subr.bf16.mxu0 0
        %1842 = vmatpush1.bf16.msra.mxu0 %v1678
        %1843 = vmatprep.subr.bf16.mxu0 0
        %1844 = vmatpush1.bf16.msra.mxu0 %v1679
        %1845 = vmatprep.subr.bf16.mxu0 0
        %1846 = vmatpush1.bf16.msra.mxu0 %v1680
        %1847 = vmatprep.subr.bf16.mxu0 0
        %1848 = vmatpush1.bf16.msra.mxu0 %v1681
        %1849 = vmatprep.subr.bf16.mxu0 0
        %1850 = vmatpush1.bf16.msra.mxu0 %v1682
        %1851 = vmatprep.subr.bf16.mxu0 0
        %1852 = vmatpush1.bf16.msra.mxu0 %v1683
        %1853 = vmatprep.subr.bf16.mxu0 0
        %1854 = vmatpush1.bf16.msra.mxu0 %v1684
        %1855 = vmatprep.subr.bf16.mxu0 0
        %1856 = vmatpush1.bf16.msra.mxu0 %v1685
        %1857 = vmatprep.subr.bf16.mxu0 0
        %1858 = vmatpush1.bf16.msra.mxu0 %v1686
        %1859 = vmatprep.subr.bf16.mxu0 0
        %1860 = vmatpush1.bf16.msra.mxu0 %v1687
        %1861 = vmatprep.subr.bf16.mxu0 0
        %1862 = vmatpush1.bf16.msra.mxu0 %v1688
        %1863 = vmatprep.subr.bf16.mxu0 0
        %1864 = vmatpush1.bf16.msra.mxu0 %v1689
        %1865 = vmatprep.subr.bf16.mxu0 0
        %1866 = vmatpush1.bf16.msra.mxu0 %v1690
        %1867 = vmatprep.subr.bf16.mxu0 0
        %1868 = vmatpush1.bf16.msra.mxu0 %v1691
        %1869 = vmatprep.mubr.bf16.mxu0 %v1383
        %1870 = vmatmul.mubr.bf16.gmra.mrb[0].mxu0 %v1382
        %v1871 = vpop.f32.mrb[0].mxu0
        %v1872 = vadd.f32 %v1775, %v1871
        %v1873 = vpop.f32.mrb[0].mxu0
        %v1874 = vpop.f32.mrb[0].mxu0
        %v1875 = vadd.f32 %v1778, %v1874
        %v1876 = vpop.f32.mrb[0].mxu0
        %1877 = vmatprep.mubr.bf16.mxu0 %v1388
        %1878 = vmatmul.mubr.bf16.gmra.mrb[0].mxu0 %v1387
        %v1879 = vpop.f32.mrb[0].mxu0
        %v1880 = vadd.f32 %v1783, %v1879
        %v1881 = vpop.f32.mrb[0].mxu0
        %v1882 = vpop.f32.mrb[0].mxu0
        %v1883 = vadd.f32 %v1786, %v1882
        %v1884 = vpop.f32.mrb[0].mxu0
        %1885 = vmatprep.mubr.bf16.mxu0 %v1393
        %1886 = vmatmul.mubr.bf16.gmra.mrb[0].mxu0 %v1392
        %v1887 = vpop.f32.mrb[0].mxu0
        %v1888 = vadd.f32 %v1791, %v1887
        %v1889 = vpop.f32.mrb[0].mxu0
        %v1890 = vpop.f32.mrb[0].mxu0
        %v1891 = vadd.f32 %v1794, %v1890
        %v1892 = vpop.f32.mrb[0].mxu0
        %1893 = vmatprep.mubr.bf16.mxu0 %v1398
        %1894 = vmatmul.mubr.bf16.gmra.mrb[0].mxu0 %v1397
        %v1895 = vpop.f32.mrb[0].mxu0
        %v1896 = vadd.f32 %v1799, %v1895
        %v1897 = vpop.f32.mrb[0].mxu0
        %v1898 = vpop.f32.mrb[0].mxu0
        %v1899 = vadd.f32 %v1802, %v1898
        %v1900 = vpop.f32.mrb[0].mxu0
        %1901 = vmatprep.mubr.bf16.mxu0 %v1403
        %1902 = vmatmul.mubr.bf16.gmra.mrb[0].mxu0 %v1402
        %v1903 = vpop.f32.mrb[0].mxu0
        %v1904 = vadd.f32 %v1807, %v1903
        %v1905 = vpop.f32.mrb[0].mxu0
        %v1906 = vpop.f32.mrb[0].mxu0
        %v1907 = vadd.f32 %v1810, %v1906
        %v1908 = vpop.f32.mrb[0].mxu0
        %1909 = vmatprep.mubr.bf16.mxu0 %v1408
        %1910 = vmatmul.mubr.bf16.gmra.mrb[0].mxu0 %v1407
        %v1911 = vpop.f32.mrb[0].mxu0
        %v1912 = vadd.f32 %v1815, %v1911
        %v1913 = vpop.f32.mrb[0].mxu0
        %v1914 = vpop.f32.mrb[0].mxu0
        %v1915 = vadd.f32 %v1818, %v1914
        %v1916 = vpop.f32.mrb[0].mxu0
        %1917 = vmatprep.mubr.bf16.mxu0 %v1413
        %1918 = vmatmul.mubr.bf16.gmra.mrb[0].mxu0 %v1412
        %v1919 = vpop.f32.mrb[0].mxu0
        %v1920 = vadd.f32 %v1823, %v1919
        %v1921 = vpop.f32.mrb[0].mxu0
        %v1922 = vpop.f32.mrb[0].mxu0
        %v1923 = vadd.f32 %v1826, %v1922
        %v1924 = vpop.f32.mrb[0].mxu0
        %1925 = vmatprep.mubr.bf16.mxu0 %v1418
        %1926 = vmatmul.mubr.bf16.gmra.mrb[0].mxu0 %v1417
        %v1927 = vpop.f32.mrb[0].mxu0
        %v1928 = vadd.f32 %v1831, %v1927
        %v1929 = vpop.f32.mrb[0].mxu0
        %v1930 = vpop.f32.mrb[0].mxu0
        %v1931 = vadd.f32 %v1834, %v1930
        %v1932 = vpop.f32.mrb[0].mxu0
        %1933 = vdwg.mxu0
        %1934 = vmatprep.subr.bf16.mxu0 0
        %1935 = vmatpush1.bf16.msra.mxu0 %v1692
        %1936 = vmatprep.subr.bf16.mxu0 0
        %1937 = vmatpush1.bf16.msra.mxu0 %v1693
        %1938 = vmatprep.subr.bf16.mxu0 0
        %1939 = vmatpush1.bf16.msra.mxu0 %v1694
        %1940 = vmatprep.subr.bf16.mxu0 0
        %1941 = vmatpush1.bf16.msra.mxu0 %v1695
        %1942 = vmatprep.subr.bf16.mxu0 0
        %1943 = vmatpush1.bf16.msra.mxu0 %v1696
        %1944 = vmatprep.subr.bf16.mxu0 0
        %1945 = vmatpush1.bf16.msra.mxu0 %v1697
        %1946 = vmatprep.subr.bf16.mxu0 0
        %1947 = vmatpush1.bf16.msra.mxu0 %v1698
        %1948 = vmatprep.subr.bf16.mxu0 0
        %1949 = vmatpush1.bf16.msra.mxu0 %v1699
        %1950 = vmatprep.subr.bf16.mxu0 0
        %1951 = vmatpush1.bf16.msra.mxu0 0
        %1952 = vmatprep.subr.bf16.mxu0 0
        %1953 = vmatpush1.bf16.msra.mxu0 0
        %1954 = vmatprep.subr.bf16.mxu0 0
        %1955 = vmatpush1.bf16.msra.mxu0 0
        %1956 = vmatprep.subr.bf16.mxu0 0
        %1957 = vmatpush1.bf16.msra.mxu0 0
        %1958 = vmatprep.subr.bf16.mxu0 0
        %1959 = vmatpush1.bf16.msra.mxu0 0
        %1960 = vmatprep.subr.bf16.mxu0 0
        %1961 = vmatpush1.bf16.msra.mxu0 0
        %1962 = vmatprep.subr.bf16.mxu0 0
        %1963 = vmatpush1.bf16.msra.mxu0 0
        %1964 = vmatprep.subr.bf16.mxu0 0
        %1965 = vmatpush1.bf16.msra.mxu0 0
        %1966 = vmatprep.mubr.bf16.mxu0 0
        %1967 = vmatmul.mubr.bf16.gmra.mrb[0].mxu0 %v1384
        %v1968 = vpop.f32.mrb[0].mxu0
        %v1969 = vadd.f32 %v1872, %v1968
        %v1970 = vpop.f32.mrb[0].mxu0
        %v1971 = vpop.f32.mrb[0].mxu0
        %v1972 = vadd.f32 %v1875, %v1971
        %v1973 = vpop.f32.mrb[0].mxu0
        %1974 = vmatprep.mubr.bf16.mxu0 0
        %1975 = vmatmul.mubr.bf16.gmra.mrb[0].mxu0 %v1389
        %v1976 = vpop.f32.mrb[0].mxu0
        %v1977 = vadd.f32 %v1880, %v1976
        %v1978 = vpop.f32.mrb[0].mxu0
        %v1979 = vpop.f32.mrb[0].mxu0
        %v1980 = vadd.f32 %v1883, %v1979
        %v1981 = vpop.f32.mrb[0].mxu0
        %1982 = vmatprep.mubr.bf16.mxu0 0
        %1983 = vmatmul.mubr.bf16.gmra.mrb[0].mxu0 %v1394
        %v1984 = vpop.f32.mrb[0].mxu0
        %v1985 = vadd.f32 %v1888, %v1984
        %v1986 = vpop.f32.mrb[0].mxu0
        %v1987 = vpop.f32.mrb[0].mxu0
        %v1988 = vadd.f32 %v1891, %v1987
        %v1989 = vpop.f32.mrb[0].mxu0
        %1990 = vmatprep.mubr.bf16.mxu0 0
        %1991 = vmatmul.mubr.bf16.gmra.mrb[0].mxu0 %v1399
        %v1992 = vpop.f32.mrb[0].mxu0
        %v1993 = vadd.f32 %v1896, %v1992
        %v1994 = vpop.f32.mrb[0].mxu0
        %v1995 = vpop.f32.mrb[0].mxu0
        %v1996 = vadd.f32 %v1899, %v1995
        %v1997 = vpop.f32.mrb[0].mxu0
        %1998 = vmatprep.mubr.bf16.mxu0 0
        %1999 = vmatmul.mubr.bf16.gmra.mrb[0].mxu0 %v1404
        %v2000 = vpop.f32.mrb[0].mxu0
        %v2001 = vadd.f32 %v1904, %v2000
        %v2002 = vpop.f32.mrb[0].mxu0
        %v2003 = vpop.f32.mrb[0].mxu0
        %v2004 = vadd.f32 %v1907, %v2003
        %v2005 = vpop.f32.mrb[0].mxu0
        %2006 = vmatprep.mubr.bf16.mxu0 0
        %2007 = vmatmul.mubr.bf16.gmra.mrb[0].mxu0 %v1409
        %v2008 = vpop.f32.mrb[0].mxu0
        %v2009 = vadd.f32 %v1912, %v2008
        %v2010 = vpop.f32.mrb[0].mxu0
        %v2011 = vpop.f32.mrb[0].mxu0
        %v2012 = vadd.f32 %v1915, %v2011
        %v2013 = vpop.f32.mrb[0].mxu0
        %2014 = vmatprep.mubr.bf16.mxu0 0
        %2015 = vmatmul.mubr.bf16.gmra.mrb[0].mxu0 %v1414
        %v2016 = vpop.f32.mrb[0].mxu0
        %v2017 = vadd.f32 %v1920, %v2016
        %v2018 = vpop.f32.mrb[0].mxu0
        %v2019 = vpop.f32.mrb[0].mxu0
        %v2020 = vadd.f32 %v1923, %v2019
        %v2021 = vpop.f32.mrb[0].mxu0
        %2022 = vmatprep.mubr.bf16.mxu0 0
        %2023 = vmatmul.mubr.bf16.gmra.mrb[0].mxu0 %v1419
        %v2024 = vpop.f32.mrb[0].mxu0
        %v2025 = vadd.f32 %v1928, %v2024
        %v2026 = vpop.f32.mrb[0].mxu0
        %v2027 = vpop.f32.mrb[0].mxu0
        %v2028 = vadd.f32 %v1931, %v2027
        %v2029 = vpop.f32.mrb[0].mxu0
        %2030 = vdwg.mxu0
        %2031 = vst [vmem:[%s325] sm:$0xff] %v1969
        %2032 = vst [vmem:[%s325 + $0x8] sm:$0xff] %v1972
        %2033 = vst [vmem:[%s325 + $0x10] sm:$0xff] %v1977
        %2034 = vst [vmem:[%s325 + $0x18] sm:$0xff] %v1980
        %2035 = vst [vmem:[%s325 + $0x20] sm:$0xff] %v1985
        %2036 = vst [vmem:[%s325 + $0x28] sm:$0xff] %v1988
        %2037 = vst [vmem:[%s325 + $0x30] sm:$0xff] %v1993
        %2038 = vst [vmem:[%s325 + $0x38] sm:$0xff] %v1996
        %2039 = vst [vmem:[%s325 + $0x40] sm:$0xff] %v2001
        %2040 = vst [vmem:[%s325 + $0x48] sm:$0xff] %v2004
        %2041 = vst [vmem:[%s325 + $0x50] sm:$0xff] %v2009
        %2042 = vst [vmem:[%s325 + $0x58] sm:$0xff] %v2012
        %2043 = vst [vmem:[%s325 + $0x60] sm:$0xff] %v2017
        %2044 = vst [vmem:[%s325 + $0x68] sm:$0xff] %v2020
        %2045 = vst [vmem:[%s325 + $0x70] sm:$0xff] %v2025
        %2046 = vst [vmem:[%s325 + $0x78] sm:$0xff] %v2028
        %s2047 = sand.u32 %s185, 1
        %s2048 = scalar_lea.sflag [#allocation4], %s2047
        %s2049 = sand.u32 %s185, 1
        %s2050 = smul.addr %s2049, 128
        %s2051 = scalar_lea.vmem [#allocation8], %s2050
        // Predicated region
        $region61: #{tpu_custom_call.1} parent=47 // pred_check
          %p2052 = pneg %p195
        $region62: #{tpu_custom_call.1} parent=47 // pred_check_branch
          %2054 = sbr.rel (%p2052) target = $region64
        $region63: #{tpu_custom_call.1} parent=47 // pred_region
          %s2056 = ssub.s32 2048, 2048
          %2057 = vsyncadd %s2048, %s2056
          %s2058 = smul.addr %s25, 16
          %s2059 = smul.addr %s2058, 128
          %s2060 = scalar_lea.hbm %s7, %s2059
          %s2061 = sshll.u32 %s2051, 4
          %s2062 = int_to_ptr.vmem [resolvable:$true] %s2061
          %2067 = dma.vmem_to_hbm [thread:$0]  %s2062, 2048, %s2060, %s2048, 128, 128, 8
        $region64: #{tpu_custom_call.1} parent=47 // pred_fallthru
          _
      $region48: #{tpu_custom_call.1} parent=5 // pred_fallthru
        _
      %p2068 = scmp.le.s32.totalorder 2, %s20
      // Predicated region
      $region65: #{tpu_custom_call.1} parent=5 // pred_check
        %p2069 = pneg %p2068
      $region66: #{tpu_custom_call.1} parent=5 // pred_check_branch
        %2071 = sbr.rel (%p2069) target = $region68
      $region67: #{tpu_custom_call.1} parent=5 // pred_region
        %s2072 = ssub.s32 %s20, 2
        // Predicated region
        $region69: #{tpu_custom_call.1} parent=67 // pred_check
          %p2073 = pneg %p201
        $region70: #{tpu_custom_call.1} parent=67 // pred_check_branch
          %2075 = sbr.rel (%p2073) target = $region72
        $region71: #{tpu_custom_call.1} parent=67 // pred_region
          %s2076 = sand.u32 %s186, 1
          %s2077 = scalar_lea.sflag [#allocation4], %s2076
          %s2078 = sand.u32 %s186, 1
          %s2079 = smul.addr %s2078, 128
          %s2080 = scalar_lea.vmem [#allocation8], %s2079
          %2081 = dma.done %s2077, 2048
        $region72: #{tpu_custom_call.1} parent=67 // pred_fallthru
          _
      $region68: #{tpu_custom_call.1} parent=5 // pred_fallthru
        _
    $region6: #{tpu_custom_call.1} parent=1 // loop_footer
      %s24 = sadd.s32 1, %s20
    $region7: #{tpu_custom_call.1} parent=1 // loop_footer_branch
      %19 = sbr.rel target = $region3
    $region8: #{tpu_custom_call.1} parent=1 // loop_exit
      _
    %2082 = vsyncpa [#allocation3], 1
    %s2083 = scalar_lea.sflag [#allocation3], 1
    %2084 = vsyncpa %s2083, 1
    %2085 = vsyncpa [#allocation6], 1
    %2086 = vsyncpa [#allocation4], 1
    %s2087 = scalar_lea.sflag [#allocation4], 1
    %2088 = vsyncpa %s2087, 1

</llo_original>
